<compile_context>
chip_gen: v5e
topology: v5e:2x2
jax: 0.10.0
libtpu: 0.0.40
codegen_flags: <defaults>
</compile_context>

<pallas_src>
import math

import jax
import jax.numpy as jnp
from jax.experimental import pallas as pl
from jax.experimental.pallas import tpu as pltpu

# ---------------- model hyper-parameters (small, synthetic) ----------------
SEQ = 8          # S
BATCH = 2        # B
D_MODEL = 32     # E
N_HEADS = 4      # H
HEAD_DIM = D_MODEL // N_HEADS
D_FF = 64        # F
NUM_LAYERS = 2
LN_EPS = 1e-5

# ---- packed weight-slab layout ----
# Matrices live in sublane-aligned row bands starting at lane 0 (lane-prefix
# slices, no relayout on unpack); the 8 bias / LayerNorm vectors are the last
# 8 rows (one vector per row).
_R_WQKV = 0 * D_MODEL                  # rows   0.. 31 : (E, 3E) fused Wqkv (scale folded into q cols)
_R_WO = 1 * D_MODEL                    # rows  32.. 63 : (E, E)
_R_W1 = 2 * D_MODEL                    # rows  64.. 95 : (E, F)
_R_W2 = 3 * D_MODEL                    # rows  96..159 : (F, E)
_R_VEC = 3 * D_MODEL + D_FF            # rows 160..167 : vectors
(_V_BQKV, _V_BO, _V_B1, _V_B2, _V_G1, _V_BE1, _V_G2, _V_BE2) = range(8)
_SLAB_ROWS = _R_VEC + 8                # 168 (multiple of 8)
_SLAB_COLS = 128                       # lane-dense slab


# --------------------------- fused encoder kernel ---------------------------
def fused_encoder_kernel(x_ref, s_ref, out_ref):
    E, F, H, Dh, B = D_MODEL, D_FF, N_HEADS, HEAD_DIM, BATCH
    T = x_ref.shape[0]                       # S * B tokens, token order (s, b)

    x = x_ref[...].astype(jnp.float32)       # (T, E)

    # ---- unpack weights once (static sublane-aligned / lane-prefix slices) ----
    wqkv = s_ref[_R_WQKV:_R_WQKV + E, 0:3 * E]      # (E, 3E); softmax scale pre-folded into q cols
    wo = s_ref[_R_WO:_R_WO + E, 0:E]                # (E, E)
    w1 = s_ref[_R_W1:_R_W1 + E, 0:F]                # (E, F)
    w2 = s_ref[_R_W2:_R_W2 + F, 0:E]                # (F, E)

    # ---- bias / LN vectors: hoist (T, *) broadcasts once (layers share weights) ----
    def vec(idx, width):
        row = s_ref[_R_VEC + idx:_R_VEC + idx + 1, 0:width]        # (1, width)
        return jnp.broadcast_to(row, (T, width))

    bqkv = vec(_V_BQKV, 3 * E)
    bo = vec(_V_BO, E)
    b1 = vec(_V_B1, F)
    b2 = vec(_V_B2, E)
    g1 = vec(_V_G1, E)
    be1 = vec(_V_BE1, E)
    g2 = vec(_V_G2, E)
    be2 = vec(_V_BE2, E)

    # ---- per-head lane masks (built once; replaces split_heads / concatenate) ----
    lane = jax.lax.broadcasted_iota(jnp.int32, (1, E), 1)
    head_masks = [
        jnp.where((lane >= h * Dh) & (lane < (h + 1) * Dh),
                  jnp.float32(1.0), jnp.float32(0.0))
        for h in range(H)
    ]

    # Block-diagonal attention bias over the flattened (s, b) token axis:
    # token t belongs to batch element (t % B); cross-batch pairs get -1e30,
    # which makes the joint softmax identical to per-batch softmax
    # (every row always has S in-batch keys, so no fully-masked rows).
    tid = jax.lax.broadcasted_iota(jnp.int32, (T, T), 0)
    uid = jax.lax.broadcasted_iota(jnp.int32, (T, T), 1)
    attn_bias = jnp.where((tid % B) == (uid % B),
                          jnp.float32(0.0), jnp.float32(-1e30))     # (T, T)

    def layer_norm(z, g, b):
        mu = jnp.mean(z, axis=-1, keepdims=True)
        d = z - mu
        var = jnp.mean(d * d, axis=-1, keepdims=True)               # biased (PyTorch)
        return d * jax.lax.rsqrt(var + LN_EPS) * g + b

    nt_dims = (((1,), (1,)), ((), ()))     # contract last (lane) axes of both operands

    for layer in range(NUM_LAYERS):        # cloned layers share weights (deepcopy)
        # ---- fused QKV projection: one MXU push, 96-lane N, one bias add ----
        qkv = jnp.dot(x, wqkv, preferred_element_type=jnp.float32) + bqkv   # (T, 3E)
        q = qkv[:, 0:E]                    # already scaled by 1/sqrt(Dh) (folded into wqkv)
        k = qkv[:, E:2 * E]
        v = qkv[:, 2 * E:3 * E]

        # ---- multi-head attention via masked-K / masked-V (no lane shuffles) ----
        attn = jnp.zeros((T, E), jnp.float32)
        for h in range(H):
            kh = k * head_masks[h]                                  # zero non-head lanes
            s = jax.lax.dot_general(q, kh, nt_dims,
                                    preferred_element_type=jnp.float32)     # (T, T)
            s = s + attn_bias
            p = jnp.exp(s - jnp.max(s, axis=-1, keepdims=True))
            # exact reciprocal (approx=True flagged as a PyTorch-parity risk)
            p = p * pl.reciprocal(jnp.sum(p, axis=-1, keepdims=True), approx=False)
            vh = v * head_masks[h]                                  # head-h lane band only
            attn = attn + jnp.dot(p, vh, preferred_element_type=jnp.float32)

        attn = jnp.dot(attn, wo, preferred_element_type=jnp.float32) + bo
        x = layer_norm(x + attn, g1, be1)                           # residual + norm1

        # ---- feed-forward ----
        hpre = jnp.dot(x, w1, preferred_element_type=jnp.float32) + b1
        hrelu = jnp.maximum(hpre, 0.0)                              # ReLU (default)
        ffn = jnp.dot(hrelu, w2, preferred_element_type=jnp.float32) + b2
        x = layer_norm(x + ffn, g2, be2)                            # residual + norm2

        out_ref[layer] = x.astype(out_ref.dtype)


# --------------------------- wrapper / pallas_call ---------------------------
@jax.jit
def transformer_encoder_forward(src_sbe, slab):
    """src_sbe: (S, B, E) seq-first (as PyTorch expects).
    Returns tuple of NUM_LAYERS per-layer outputs, each (S, B, E)
    (== `outputs[1:]` of the PyTorch module; final norm is None)."""
    S, B, E = src_sbe.shape
    T = S * B
    x2d = src_sbe.reshape(T, E)                       # free, row-major compatible

    out = pl.pallas_call(
        fused_encoder_kernel,
        out_shape=jax.ShapeDtypeStruct((NUM_LAYERS, T, E), jnp.float32),
        grid_spec=pltpu.PrefetchScalarGridSpec(
            num_scalar_prefetch=0,
            grid=(1,),                                 # one step: whole problem in VMEM
            in_specs=[
                pl.BlockSpec((T, E), lambda i: (0, 0)),
                pl.BlockSpec(slab.shape, lambda i: (0, 0)),
            ],
            out_specs=pl.BlockSpec((NUM_LAYERS, T, E), lambda i: (0, 0, 0)),
        ),
        compiler_params=pltpu.CompilerParams(
            dimension_semantics=("arbitrary",)),
    )(x2d, slab)

    per_layer = out.reshape(NUM_LAYERS, S, B, E)       # free reshape back to seq-first
    return tuple(per_layer[l] for l in range(NUM_LAYERS))


# --------------------------- parameter construction -------------------------
def init_layer_params(key):
    """Deterministic synthetic weights for one nn.TransformerEncoderLayer
    (PyTorch-native shapes). All cloned layers share these (copy.deepcopy)."""
    ks = jax.random.split(key, 6)
    s = 0.05
    return {
        "wqkv": s * jax.random.normal(ks[0], (3 * D_MODEL, D_MODEL), jnp.float32),
        "bqkv": s * jax.random.normal(ks[1], (1, 3 * D_MODEL), jnp.float32),
        "wo":   s * jax.random.normal(ks[2], (D_MODEL, D_MODEL), jnp.float32),
        "bo":   s * jax.random.normal(ks[3], (1, D_MODEL), jnp.float32),
        "w1":   s * jax.random.normal(ks[4], (D_FF, D_MODEL), jnp.float32),
        "b1":   jnp.zeros((1, D_FF), jnp.float32),
        "w2":   s * jax.random.normal(ks[5], (D_MODEL, D_FF), jnp.float32),
        "b2":   jnp.zeros((1, D_MODEL), jnp.float32),
        "g1":   jnp.ones((1, D_MODEL), jnp.float32),
        "be1":  jnp.zeros((1, D_MODEL), jnp.float32),
        "g2":   jnp.ones((1, D_MODEL), jnp.float32),
        "be2":  jnp.zeros((1, D_MODEL), jnp.float32),
    }


def pack_params(p):
    """Pre-transpose to x @ W form, fuse [Wq|Wk|Wv], fold the 1/sqrt(Dh) softmax
    scale into the q columns / bias, and pack EVERYTHING into one (168, 128)
    slab (single extra input DMA). Done once, outside jit."""
    E, F = D_MODEL, D_FF
    scale = 1.0 / math.sqrt(HEAD_DIM)

    wqkv_t = p["wqkv"].T                                      # (E, 3E) = [q|k|v] cols
    wqkv_t = wqkv_t.at[:, 0:E].multiply(scale)                # fold softmax scale into q
    bqkv = p["bqkv"].reshape(3 * E)
    bqkv = bqkv.at[0:E].multiply(scale)

    slab = jnp.zeros((_SLAB_ROWS, _SLAB_COLS), jnp.float32)
    slab = slab.at[_R_WQKV:_R_WQKV + E, 0:3 * E].set(wqkv_t)
    slab = slab.at[_R_WO:_R_WO + E, 0:E].set(p["wo"].T)
    slab = slab.at[_R_W1:_R_W1 + E, 0:F].set(p["w1"].T)
    slab = slab.at[_R_W2:_R_W2 + F, 0:E].set(p["w2"].T)

    slab = slab.at[_R_VEC + _V_BQKV, 0:3 * E].set(bqkv)
    slab = slab.at[_R_VEC + _V_BO, 0:E].set(p["bo"].reshape(E))
    slab = slab.at[_R_VEC + _V_B1, 0:F].set(p["b1"].reshape(F))
    slab = slab.at[_R_VEC + _V_B2, 0:E].set(p["b2"].reshape(E))
    slab = slab.at[_R_VEC + _V_G1, 0:E].set(p["g1"].reshape(E))
    slab = slab.at[_R_VEC + _V_BE1, 0:E].set(p["be1"].reshape(E))
    slab = slab.at[_R_VEC + _V_G2, 0:E].set(p["g2"].reshape(E))
    slab = slab.at[_R_VEC + _V_BE2, 0:E].set(p["be2"].reshape(E))
    return slab


if __name__ == "__main__":
    key = jax.random.PRNGKey(0)
    k_src, k_par = jax.random.split(key)
    src = jax.random.normal(k_src, (SEQ, BATCH, D_MODEL), jnp.float32)
    params = init_layer_params(k_par)
    slab = pack_params(params)

    outs = transformer_encoder_forward(src, slab)
    for o in outs:
        jax.block_until_ready(o)

    assert len(outs) == NUM_LAYERS
    assert all(o.shape == (SEQ, BATCH, D_MODEL) for o in outs)
    assert all(bool(jnp.all(jnp.isfinite(o))) for o in outs)
    print("KERNEL_OK")
</pallas_src>

<mosaic_0001>
module attributes {stable_mosaic.version = 11 : i64} {
  func.func @fused_encoder_kernel(%arg0: i32, %arg1: memref<16x32xf32, #tpu.memory_space<vmem>>, %arg2: memref<168x128xf32, #tpu.memory_space<vmem>>, %arg3: memref<2x16x32xf32, #tpu.memory_space<vmem>>) attributes {dimension_semantics = [#tpu.dimension_semantics<arbitrary>], iteration_bounds = array<i64: 1>, scalar_prefetch = 0 : i64, scratch_operands = 0 : i64, tpu.core_type = #tpu.core_type<tc>, window_params = [{pipeline_mode = #tpu.pipeline_mode<synchronous>, transform_indices = @transform_0, window_bounds = array<i64: 16, 32>}, {pipeline_mode = #tpu.pipeline_mode<synchronous>, transform_indices = @transform_1, window_bounds = array<i64: 168, 128>}, {pipeline_mode = #tpu.pipeline_mode<synchronous>, transform_indices = @transform_2, window_bounds = array<i64: 2, 16, 32>}]} {
    %c0 = arith.constant 0 : index
    %c0_0 = arith.constant 0 : index
    %0 = vector.load %arg1[%c0, %c0_0] : memref<16x32xf32, #tpu.memory_space<vmem>>, vector<16x32xf32>
    %c0_1 = arith.constant 0 : index
    %c0_2 = arith.constant 0 : index
    %1 = vector.load %arg2[%c0_1, %c0_2] : memref<168x128xf32, #tpu.memory_space<vmem>>, vector<32x96xf32>
    %c32 = arith.constant 32 : index
    %c0_3 = arith.constant 0 : index
    %2 = vector.load %arg2[%c32, %c0_3] : memref<168x128xf32, #tpu.memory_space<vmem>>, vector<32x32xf32>
    %c64 = arith.constant 64 : index
    %c0_4 = arith.constant 0 : index
    %3 = vector.load %arg2[%c64, %c0_4] : memref<168x128xf32, #tpu.memory_space<vmem>>, vector<32x64xf32>
    %c96 = arith.constant 96 : index
    %c0_5 = arith.constant 0 : index
    %4 = vector.load %arg2[%c96, %c0_5] : memref<168x128xf32, #tpu.memory_space<vmem>>, vector<64x32xf32>
    %c160 = arith.constant 160 : index
    %c0_6 = arith.constant 0 : index
    %5 = vector.load %arg2[%c160, %c0_6] : memref<168x128xf32, #tpu.memory_space<vmem>>, vector<1x96xf32>
    %6 = vector.shape_cast %5 : vector<1x96xf32> to vector<1x96xf32>
    %7 = vector.broadcast %6 : vector<1x96xf32> to vector<16x96xf32>
    %c161 = arith.constant 161 : index
    %c0_7 = arith.constant 0 : index
    %8 = vector.load %arg2[%c161, %c0_7] : memref<168x128xf32, #tpu.memory_space<vmem>>, vector<1x32xf32>
    %9 = vector.shape_cast %8 : vector<1x32xf32> to vector<1x32xf32>
    %10 = vector.broadcast %9 : vector<1x32xf32> to vector<16x32xf32>
    %c162 = arith.constant 162 : index
    %c0_8 = arith.constant 0 : index
    %11 = vector.load %arg2[%c162, %c0_8] : memref<168x128xf32, #tpu.memory_space<vmem>>, vector<1x64xf32>
    %12 = vector.shape_cast %11 : vector<1x64xf32> to vector<1x64xf32>
    %13 = vector.broadcast %12 : vector<1x64xf32> to vector<16x64xf32>
    %c163 = arith.constant 163 : index
    %c0_9 = arith.constant 0 : index
    %14 = vector.load %arg2[%c163, %c0_9] : memref<168x128xf32, #tpu.memory_space<vmem>>, vector<1x32xf32>
    %15 = vector.shape_cast %14 : vector<1x32xf32> to vector<1x32xf32>
    %16 = vector.broadcast %15 : vector<1x32xf32> to vector<16x32xf32>
    %c164 = arith.constant 164 : index
    %c0_10 = arith.constant 0 : index
    %17 = vector.load %arg2[%c164, %c0_10] : memref<168x128xf32, #tpu.memory_space<vmem>>, vector<1x32xf32>
    %18 = vector.shape_cast %17 : vector<1x32xf32> to vector<1x32xf32>
    %19 = vector.broadcast %18 : vector<1x32xf32> to vector<16x32xf32>
    %c165 = arith.constant 165 : index
    %c0_11 = arith.constant 0 : index
    %20 = vector.load %arg2[%c165, %c0_11] : memref<168x128xf32, #tpu.memory_space<vmem>>, vector<1x32xf32>
    %21 = vector.shape_cast %20 : vector<1x32xf32> to vector<1x32xf32>
    %22 = vector.broadcast %21 : vector<1x32xf32> to vector<16x32xf32>
    %c166 = arith.constant 166 : index
    %c0_12 = arith.constant 0 : index
    %23 = vector.load %arg2[%c166, %c0_12] : memref<168x128xf32, #tpu.memory_space<vmem>>, vector<1x32xf32>
    %24 = vector.shape_cast %23 : vector<1x32xf32> to vector<1x32xf32>
    %25 = vector.broadcast %24 : vector<1x32xf32> to vector<16x32xf32>
    %c167 = arith.constant 167 : index
    %c0_13 = arith.constant 0 : index
    %26 = vector.load %arg2[%c167, %c0_13] : memref<168x128xf32, #tpu.memory_space<vmem>>, vector<1x32xf32>
    %27 = vector.shape_cast %26 : vector<1x32xf32> to vector<1x32xf32>
    %28 = vector.broadcast %27 : vector<1x32xf32> to vector<16x32xf32>
    %29 = tpu.iota {dimensions = array<i32: 1>} : vector<1x32xi32>
    %c0_i32 = arith.constant 0 : i32
    %30 = vector.broadcast %c0_i32 : i32 to vector<1x32xi32>
    %31 = arith.cmpi sge, %29, %30 : vector<1x32xi32>
    %c8_i32 = arith.constant 8 : i32
    %32 = vector.broadcast %c8_i32 : i32 to vector<1x32xi32>
    %33 = arith.cmpi slt, %29, %32 : vector<1x32xi32>
    %34 = arith.andi %31, %33 : vector<1x32xi1>
    %cst = arith.constant 1.000000e+00 : f32
    %cst_14 = arith.constant 0.000000e+00 : f32
    %35 = vector.broadcast %cst : f32 to vector<1x32xf32>
    %36 = vector.broadcast %cst_14 : f32 to vector<1x32xf32>
    %37 = arith.select %34, %35, %36 : vector<1x32xi1>, vector<1x32xf32>
    %c8_i32_15 = arith.constant 8 : i32
    %38 = vector.broadcast %c8_i32_15 : i32 to vector<1x32xi32>
    %39 = arith.cmpi sge, %29, %38 : vector<1x32xi32>
    %c16_i32 = arith.constant 16 : i32
    %40 = vector.broadcast %c16_i32 : i32 to vector<1x32xi32>
    %41 = arith.cmpi slt, %29, %40 : vector<1x32xi32>
    %42 = arith.andi %39, %41 : vector<1x32xi1>
    %cst_16 = arith.constant 1.000000e+00 : f32
    %cst_17 = arith.constant 0.000000e+00 : f32
    %43 = vector.broadcast %cst_16 : f32 to vector<1x32xf32>
    %44 = vector.broadcast %cst_17 : f32 to vector<1x32xf32>
    %45 = arith.select %42, %43, %44 : vector<1x32xi1>, vector<1x32xf32>
    %c16_i32_18 = arith.constant 16 : i32
    %46 = vector.broadcast %c16_i32_18 : i32 to vector<1x32xi32>
    %47 = arith.cmpi sge, %29, %46 : vector<1x32xi32>
    %c24_i32 = arith.constant 24 : i32
    %48 = vector.broadcast %c24_i32 : i32 to vector<1x32xi32>
    %49 = arith.cmpi slt, %29, %48 : vector<1x32xi32>
    %50 = arith.andi %47, %49 : vector<1x32xi1>
    %cst_19 = arith.constant 1.000000e+00 : f32
    %cst_20 = arith.constant 0.000000e+00 : f32
    %51 = vector.broadcast %cst_19 : f32 to vector<1x32xf32>
    %52 = vector.broadcast %cst_20 : f32 to vector<1x32xf32>
    %53 = arith.select %50, %51, %52 : vector<1x32xi1>, vector<1x32xf32>
    %c24_i32_21 = arith.constant 24 : i32
    %54 = vector.broadcast %c24_i32_21 : i32 to vector<1x32xi32>
    %55 = arith.cmpi sge, %29, %54 : vector<1x32xi32>
    %c32_i32 = arith.constant 32 : i32
    %56 = vector.broadcast %c32_i32 : i32 to vector<1x32xi32>
    %57 = arith.cmpi slt, %29, %56 : vector<1x32xi32>
    %58 = arith.andi %55, %57 : vector<1x32xi1>
    %cst_22 = arith.constant 1.000000e+00 : f32
    %cst_23 = arith.constant 0.000000e+00 : f32
    %59 = vector.broadcast %cst_22 : f32 to vector<1x32xf32>
    %60 = vector.broadcast %cst_23 : f32 to vector<1x32xf32>
    %61 = arith.select %58, %59, %60 : vector<1x32xi1>, vector<1x32xf32>
    %62 = tpu.iota {dimensions = array<i32: 0>} : vector<16x16xi32>
    %63 = tpu.iota {dimensions = array<i32: 1>} : vector<16x16xi32>
    %c2_i32 = arith.constant 2 : i32
    %c0_i32_24 = arith.constant 0 : i32
    %64 = arith.cmpi eq, %c2_i32, %c0_i32_24 : i32
    %c1_i32 = arith.constant 1 : i32
    %65 = arith.select %64, %c1_i32, %c2_i32 : i32
    %66 = vector.broadcast %65 : i32 to vector<16x16xi32>
    %67 = arith.remsi %62, %66 : vector<16x16xi32>
    %c0_i32_25 = arith.constant 0 : i32
    %68 = vector.broadcast %c0_i32_25 : i32 to vector<16x16xi32>
    %69 = arith.cmpi ne, %67, %68 : vector<16x16xi32>
    %c0_i32_26 = arith.constant 0 : i32
    %70 = vector.broadcast %c0_i32_26 : i32 to vector<16x16xi32>
    %71 = arith.cmpi slt, %67, %70 : vector<16x16xi32>
    %c0_i32_27 = arith.constant 0 : i32
    %72 = arith.cmpi slt, %65, %c0_i32_27 : i32
    %73 = vector.broadcast %72 : i1 to vector<16x16xi1>
    %74 = vector.broadcast %73 : vector<16x16xi1> to vector<16x16xi1>
    %75 = arith.xori %71, %74 : vector<16x16xi1>
    %76 = arith.andi %75, %69 : vector<16x16xi1>
    %77 = vector.broadcast %65 : i32 to vector<16x16xi32>
    %78 = arith.addi %67, %77 : vector<16x16xi32>
    %79 = arith.select %76, %78, %67 : vector<16x16xi1>, vector<16x16xi32>
    %c2_i32_28 = arith.constant 2 : i32
    %c0_i32_29 = arith.constant 0 : i32
    %80 = arith.cmpi eq, %c2_i32_28, %c0_i32_29 : i32
    %c1_i32_30 = arith.constant 1 : i32
    %81 = arith.select %80, %c1_i32_30, %c2_i32_28 : i32
    %82 = vector.broadcast %81 : i32 to vector<16x16xi32>
    %83 = arith.remsi %63, %82 : vector<16x16xi32>
    %c0_i32_31 = arith.constant 0 : i32
    %84 = vector.broadcast %c0_i32_31 : i32 to vector<16x16xi32>
    %85 = arith.cmpi ne, %83, %84 : vector<16x16xi32>
    %c0_i32_32 = arith.constant 0 : i32
    %86 = vector.broadcast %c0_i32_32 : i32 to vector<16x16xi32>
    %87 = arith.cmpi slt, %83, %86 : vector<16x16xi32>
    %c0_i32_33 = arith.constant 0 : i32
    %88 = arith.cmpi slt, %81, %c0_i32_33 : i32
    %89 = vector.broadcast %88 : i1 to vector<16x16xi1>
    %90 = vector.broadcast %89 : vector<16x16xi1> to vector<16x16xi1>
    %91 = arith.xori %87, %90 : vector<16x16xi1>
    %92 = arith.andi %91, %85 : vector<16x16xi1>
    %93 = vector.broadcast %81 : i32 to vector<16x16xi32>
    %94 = arith.addi %83, %93 : vector<16x16xi32>
    %95 = arith.select %92, %94, %83 : vector<16x16xi1>, vector<16x16xi32>
    %96 = arith.cmpi eq, %79, %95 : vector<16x16xi32>
    %cst_34 = arith.constant 0.000000e+00 : f32
    %cst_35 = arith.constant -1.000000e+30 : f32
    %97 = vector.broadcast %cst_34 : f32 to vector<16x16xf32>
    %98 = vector.broadcast %cst_35 : f32 to vector<16x16xf32>
    %99 = arith.select %96, %97, %98 : vector<16x16xi1>, vector<16x16xf32>
    %cst_36 = arith.constant dense<0.000000e+00> : vector<16x96xf32>
    %100 = tpu.matmul %0, %1, %cst_36 {dimension_numbers = #tpu.dot_dimension_numbers<[1], [0], [0], [1], [0, 0, 1, 1], [], []>} : vector<16x32xf32>, vector<32x96xf32>, vector<16x96xf32> -> vector<16x96xf32>
    %101 = arith.addf %100, %7 : vector<16x96xf32>
    %102 = vector.extract_strided_slice %101 {offsets = [0, 0], sizes = [16, 32], strides = [1, 1]} : vector<16x96xf32> to vector<16x32xf32>
    %103 = vector.extract_strided_slice %101 {offsets = [0, 32], sizes = [16, 32], strides = [1, 1]} : vector<16x96xf32> to vector<16x32xf32>
    %104 = vector.extract_strided_slice %101 {offsets = [0, 64], sizes = [16, 32], strides = [1, 1]} : vector<16x96xf32> to vector<16x32xf32>
    %cst_37 = arith.constant 0.000000e+00 : f32
    %105 = vector.broadcast %cst_37 : f32 to vector<16x32xf32>
    %106 = vector.broadcast %37 : vector<1x32xf32> to vector<16x32xf32>
    %107 = arith.mulf %103, %106 : vector<16x32xf32>
    %cst_38 = arith.constant dense<0.000000e+00> : vector<16x16xf32>
    %108 = tpu.matmul %102, %107, %cst_38 {dimension_numbers = #tpu.dot_dimension_numbers<[1], [1], [0], [0], [0, 0, 1, 0], [], []>} : vector<16x32xf32>, vector<16x32xf32>, vector<16x16xf32> -> vector<16x16xf32>
    %109 = arith.addf %108, %99 : vector<16x16xf32>
    %cst_39 = arith.constant dense<0xFF800000> : vector<16xf32>
    %110 = vector.multi_reduction <maximumf>, %109, %cst_39 [1] : vector<16x16xf32> to vector<16xf32>
    %111 = vector.shape_cast %110 : vector<16xf32> to vector<16x1xf32>
    %112 = vector.broadcast %111 : vector<16x1xf32> to vector<16x16xf32>
    %113 = arith.subf %109, %112 : vector<16x16xf32>
    %114 = math.exp %113 : vector<16x16xf32>
    %cst_40 = arith.constant dense<0.000000e+00> : vector<16xf32>
    %115 = vector.multi_reduction <add>, %114, %cst_40 [1] : vector<16x16xf32> to vector<16xf32>
    %116 = vector.shape_cast %115 : vector<16xf32> to vector<16x1xf32>
    %117 = tpu.reciprocal %116 : vector<16x1xf32> -> vector<16x1xf32>
    %118 = vector.broadcast %117 : vector<16x1xf32> to vector<16x16xf32>
    %119 = arith.mulf %114, %118 : vector<16x16xf32>
    %120 = vector.broadcast %37 : vector<1x32xf32> to vector<16x32xf32>
    %121 = arith.mulf %104, %120 : vector<16x32xf32>
    %cst_41 = arith.constant dense<0.000000e+00> : vector<16x32xf32>
    %122 = tpu.matmul %119, %121, %cst_41 {dimension_numbers = #tpu.dot_dimension_numbers<[1], [0], [0], [1], [0, 0, 1, 1], [], []>} : vector<16x16xf32>, vector<16x32xf32>, vector<16x32xf32> -> vector<16x32xf32>
    %123 = arith.addf %105, %122 : vector<16x32xf32>
    %124 = vector.broadcast %45 : vector<1x32xf32> to vector<16x32xf32>
    %125 = arith.mulf %103, %124 : vector<16x32xf32>
    %cst_42 = arith.constant dense<0.000000e+00> : vector<16x16xf32>
    %126 = tpu.matmul %102, %125, %cst_42 {dimension_numbers = #tpu.dot_dimension_numbers<[1], [1], [0], [0], [0, 0, 1, 0], [], []>} : vector<16x32xf32>, vector<16x32xf32>, vector<16x16xf32> -> vector<16x16xf32>
    %127 = arith.addf %126, %99 : vector<16x16xf32>
    %cst_43 = arith.constant dense<0xFF800000> : vector<16xf32>
    %128 = vector.multi_reduction <maximumf>, %127, %cst_43 [1] : vector<16x16xf32> to vector<16xf32>
    %129 = vector.shape_cast %128 : vector<16xf32> to vector<16x1xf32>
    %130 = vector.broadcast %129 : vector<16x1xf32> to vector<16x16xf32>
    %131 = arith.subf %127, %130 : vector<16x16xf32>
    %132 = math.exp %131 : vector<16x16xf32>
    %cst_44 = arith.constant dense<0.000000e+00> : vector<16xf32>
    %133 = vector.multi_reduction <add>, %132, %cst_44 [1] : vector<16x16xf32> to vector<16xf32>
    %134 = vector.shape_cast %133 : vector<16xf32> to vector<16x1xf32>
    %135 = tpu.reciprocal %134 : vector<16x1xf32> -> vector<16x1xf32>
    %136 = vector.broadcast %135 : vector<16x1xf32> to vector<16x16xf32>
    %137 = arith.mulf %132, %136 : vector<16x16xf32>
    %138 = vector.broadcast %45 : vector<1x32xf32> to vector<16x32xf32>
    %139 = arith.mulf %104, %138 : vector<16x32xf32>
    %cst_45 = arith.constant dense<0.000000e+00> : vector<16x32xf32>
    %140 = tpu.matmul %137, %139, %cst_45 {dimension_numbers = #tpu.dot_dimension_numbers<[1], [0], [0], [1], [0, 0, 1, 1], [], []>} : vector<16x16xf32>, vector<16x32xf32>, vector<16x32xf32> -> vector<16x32xf32>
    %141 = arith.addf %123, %140 : vector<16x32xf32>
    %142 = vector.broadcast %53 : vector<1x32xf32> to vector<16x32xf32>
    %143 = arith.mulf %103, %142 : vector<16x32xf32>
    %cst_46 = arith.constant dense<0.000000e+00> : vector<16x16xf32>
    %144 = tpu.matmul %102, %143, %cst_46 {dimension_numbers = #tpu.dot_dimension_numbers<[1], [1], [0], [0], [0, 0, 1, 0], [], []>} : vector<16x32xf32>, vector<16x32xf32>, vector<16x16xf32> -> vector<16x16xf32>
    %145 = arith.addf %144, %99 : vector<16x16xf32>
    %cst_47 = arith.constant dense<0xFF800000> : vector<16xf32>
    %146 = vector.multi_reduction <maximumf>, %145, %cst_47 [1] : vector<16x16xf32> to vector<16xf32>
    %147 = vector.shape_cast %146 : vector<16xf32> to vector<16x1xf32>
    %148 = vector.broadcast %147 : vector<16x1xf32> to vector<16x16xf32>
    %149 = arith.subf %145, %148 : vector<16x16xf32>
    %150 = math.exp %149 : vector<16x16xf32>
    %cst_48 = arith.constant dense<0.000000e+00> : vector<16xf32>
    %151 = vector.multi_reduction <add>, %150, %cst_48 [1] : vector<16x16xf32> to vector<16xf32>
    %152 = vector.shape_cast %151 : vector<16xf32> to vector<16x1xf32>
    %153 = tpu.reciprocal %152 : vector<16x1xf32> -> vector<16x1xf32>
    %154 = vector.broadcast %153 : vector<16x1xf32> to vector<16x16xf32>
    %155 = arith.mulf %150, %154 : vector<16x16xf32>
    %156 = vector.broadcast %53 : vector<1x32xf32> to vector<16x32xf32>
    %157 = arith.mulf %104, %156 : vector<16x32xf32>
    %cst_49 = arith.constant dense<0.000000e+00> : vector<16x32xf32>
    %158 = tpu.matmul %155, %157, %cst_49 {dimension_numbers = #tpu.dot_dimension_numbers<[1], [0], [0], [1], [0, 0, 1, 1], [], []>} : vector<16x16xf32>, vector<16x32xf32>, vector<16x32xf32> -> vector<16x32xf32>
    %159 = arith.addf %141, %158 : vector<16x32xf32>
    %160 = vector.broadcast %61 : vector<1x32xf32> to vector<16x32xf32>
    %161 = arith.mulf %103, %160 : vector<16x32xf32>
    %cst_50 = arith.constant dense<0.000000e+00> : vector<16x16xf32>
    %162 = tpu.matmul %102, %161, %cst_50 {dimension_numbers = #tpu.dot_dimension_numbers<[1], [1], [0], [0], [0, 0, 1, 0], [], []>} : vector<16x32xf32>, vector<16x32xf32>, vector<16x16xf32> -> vector<16x16xf32>
    %163 = arith.addf %162, %99 : vector<16x16xf32>
    %cst_51 = arith.constant dense<0xFF800000> : vector<16xf32>
    %164 = vector.multi_reduction <maximumf>, %163, %cst_51 [1] : vector<16x16xf32> to vector<16xf32>
    %165 = vector.shape_cast %164 : vector<16xf32> to vector<16x1xf32>
    %166 = vector.broadcast %165 : vector<16x1xf32> to vector<16x16xf32>
    %167 = arith.subf %163, %166 : vector<16x16xf32>
    %168 = math.exp %167 : vector<16x16xf32>
    %cst_52 = arith.constant dense<0.000000e+00> : vector<16xf32>
    %169 = vector.multi_reduction <add>, %168, %cst_52 [1] : vector<16x16xf32> to vector<16xf32>
    %170 = vector.shape_cast %169 : vector<16xf32> to vector<16x1xf32>
    %171 = tpu.reciprocal %170 : vector<16x1xf32> -> vector<16x1xf32>
    %172 = vector.broadcast %171 : vector<16x1xf32> to vector<16x16xf32>
    %173 = arith.mulf %168, %172 : vector<16x16xf32>
    %174 = vector.broadcast %61 : vector<1x32xf32> to vector<16x32xf32>
    %175 = arith.mulf %104, %174 : vector<16x32xf32>
    %cst_53 = arith.constant dense<0.000000e+00> : vector<16x32xf32>
    %176 = tpu.matmul %173, %175, %cst_53 {dimension_numbers = #tpu.dot_dimension_numbers<[1], [0], [0], [1], [0, 0, 1, 1], [], []>} : vector<16x16xf32>, vector<16x32xf32>, vector<16x32xf32> -> vector<16x32xf32>
    %177 = arith.addf %159, %176 : vector<16x32xf32>
    %cst_54 = arith.constant dense<0.000000e+00> : vector<16x32xf32>
    %178 = tpu.matmul %177, %2, %cst_54 {dimension_numbers = #tpu.dot_dimension_numbers<[1], [0], [0], [1], [0, 0, 1, 1], [], []>} : vector<16x32xf32>, vector<32x32xf32>, vector<16x32xf32> -> vector<16x32xf32>
    %179 = arith.addf %178, %10 : vector<16x32xf32>
    %180 = arith.addf %0, %179 : vector<16x32xf32>
    %cst_55 = arith.constant dense<0.000000e+00> : vector<16xf32>
    %181 = vector.multi_reduction <add>, %180, %cst_55 [1] : vector<16x32xf32> to vector<16xf32>
    %182 = vector.shape_cast %181 : vector<16xf32> to vector<16x1xf32>
    %cst_56 = arith.constant 3.200000e+01 : f32
    %183 = vector.broadcast %cst_56 : f32 to vector<16x1xf32>
    %184 = arith.divf %182, %183 : vector<16x1xf32>
    %185 = vector.broadcast %184 : vector<16x1xf32> to vector<16x32xf32>
    %186 = arith.subf %180, %185 : vector<16x32xf32>
    %187 = arith.mulf %186, %186 : vector<16x32xf32>
    %cst_57 = arith.constant dense<0.000000e+00> : vector<16xf32>
    %188 = vector.multi_reduction <add>, %187, %cst_57 [1] : vector<16x32xf32> to vector<16xf32>
    %189 = vector.shape_cast %188 : vector<16xf32> to vector<16x1xf32>
    %cst_58 = arith.constant 3.200000e+01 : f32
    %190 = vector.broadcast %cst_58 : f32 to vector<16x1xf32>
    %191 = arith.divf %189, %190 : vector<16x1xf32>
    %cst_59 = arith.constant 9.99999974E-6 : f32
    %192 = vector.broadcast %cst_59 : f32 to vector<16x1xf32>
    %193 = arith.addf %191, %192 : vector<16x1xf32>
    %194 = math.rsqrt %193 : vector<16x1xf32>
    %195 = vector.broadcast %194 : vector<16x1xf32> to vector<16x32xf32>
    %196 = arith.mulf %186, %195 : vector<16x32xf32>
    %197 = arith.mulf %196, %19 : vector<16x32xf32>
    %198 = arith.addf %197, %22 : vector<16x32xf32>
    %cst_60 = arith.constant dense<0.000000e+00> : vector<16x64xf32>
    %199 = tpu.matmul %198, %3, %cst_60 {dimension_numbers = #tpu.dot_dimension_numbers<[1], [0], [0], [1], [0, 0, 1, 1], [], []>} : vector<16x32xf32>, vector<32x64xf32>, vector<16x64xf32> -> vector<16x64xf32>
    %200 = arith.addf %199, %13 : vector<16x64xf32>
    %cst_61 = arith.constant 0.000000e+00 : f32
    %201 = vector.broadcast %cst_61 : f32 to vector<16x64xf32>
    %202 = arith.maximumf %200, %201 : vector<16x64xf32>
    %cst_62 = arith.constant dense<0.000000e+00> : vector<16x32xf32>
    %203 = tpu.matmul %202, %4, %cst_62 {dimension_numbers = #tpu.dot_dimension_numbers<[1], [0], [0], [1], [0, 0, 1, 1], [], []>} : vector<16x64xf32>, vector<64x32xf32>, vector<16x32xf32> -> vector<16x32xf32>
    %204 = arith.addf %203, %16 : vector<16x32xf32>
    %205 = arith.addf %198, %204 : vector<16x32xf32>
    %cst_63 = arith.constant dense<0.000000e+00> : vector<16xf32>
    %206 = vector.multi_reduction <add>, %205, %cst_63 [1] : vector<16x32xf32> to vector<16xf32>
    %207 = vector.shape_cast %206 : vector<16xf32> to vector<16x1xf32>
    %cst_64 = arith.constant 3.200000e+01 : f32
    %208 = vector.broadcast %cst_64 : f32 to vector<16x1xf32>
    %209 = arith.divf %207, %208 : vector<16x1xf32>
    %210 = vector.broadcast %209 : vector<16x1xf32> to vector<16x32xf32>
    %211 = arith.subf %205, %210 : vector<16x32xf32>
    %212 = arith.mulf %211, %211 : vector<16x32xf32>
    %cst_65 = arith.constant dense<0.000000e+00> : vector<16xf32>
    %213 = vector.multi_reduction <add>, %212, %cst_65 [1] : vector<16x32xf32> to vector<16xf32>
    %214 = vector.shape_cast %213 : vector<16xf32> to vector<16x1xf32>
    %cst_66 = arith.constant 3.200000e+01 : f32
    %215 = vector.broadcast %cst_66 : f32 to vector<16x1xf32>
    %216 = arith.divf %214, %215 : vector<16x1xf32>
    %cst_67 = arith.constant 9.99999974E-6 : f32
    %217 = vector.broadcast %cst_67 : f32 to vector<16x1xf32>
    %218 = arith.addf %216, %217 : vector<16x1xf32>
    %219 = math.rsqrt %218 : vector<16x1xf32>
    %220 = vector.broadcast %219 : vector<16x1xf32> to vector<16x32xf32>
    %221 = arith.mulf %211, %220 : vector<16x32xf32>
    %222 = arith.mulf %221, %25 : vector<16x32xf32>
    %223 = arith.addf %222, %28 : vector<16x32xf32>
    %c0_68 = arith.constant 0 : index
    %c0_69 = arith.constant 0 : index
    %c0_70 = arith.constant 0 : index
    %224 = vector.load %arg3[%c0_68, %c0_69, %c0_70] : memref<2x16x32xf32, #tpu.memory_space<vmem>>, vector<1x16x32xf32>
    %225 = vector.shape_cast %224 : vector<1x16x32xf32> to vector<16x32xf32>
    %226 = vector.shape_cast %223 : vector<16x32xf32> to vector<1x16x32xf32>
    tpu.vector_store %arg3[%c0_68, %c0_69, %c0_70], %226 {strides = array<i32>} : memref<2x16x32xf32, #tpu.memory_space<vmem>>, vector<1x16x32xf32>,
    %cst_71 = arith.constant dense<0.000000e+00> : vector<16x96xf32>
    %227 = tpu.matmul %223, %1, %cst_71 {dimension_numbers = #tpu.dot_dimension_numbers<[1], [0], [0], [1], [0, 0, 1, 1], [], []>} : vector<16x32xf32>, vector<32x96xf32>, vector<16x96xf32> -> vector<16x96xf32>
    %228 = arith.addf %227, %7 : vector<16x96xf32>
    %229 = vector.extract_strided_slice %228 {offsets = [0, 0], sizes = [16, 32], strides = [1, 1]} : vector<16x96xf32> to vector<16x32xf32>
    %230 = vector.extract_strided_slice %228 {offsets = [0, 32], sizes = [16, 32], strides = [1, 1]} : vector<16x96xf32> to vector<16x32xf32>
    %231 = vector.extract_strided_slice %228 {offsets = [0, 64], sizes = [16, 32], strides = [1, 1]} : vector<16x96xf32> to vector<16x32xf32>
    %cst_72 = arith.constant 0.000000e+00 : f32
    %232 = vector.broadcast %cst_72 : f32 to vector<16x32xf32>
    %233 = vector.broadcast %37 : vector<1x32xf32> to vector<16x32xf32>
    %234 = arith.mulf %230, %233 : vector<16x32xf32>
    %cst_73 = arith.constant dense<0.000000e+00> : vector<16x16xf32>
    %235 = tpu.matmul %229, %234, %cst_73 {dimension_numbers = #tpu.dot_dimension_numbers<[1], [1], [0], [0], [0, 0, 1, 0], [], []>} : vector<16x32xf32>, vector<16x32xf32>, vector<16x16xf32> -> vector<16x16xf32>
    %236 = arith.addf %235, %99 : vector<16x16xf32>
    %cst_74 = arith.constant dense<0xFF800000> : vector<16xf32>
    %237 = vector.multi_reduction <maximumf>, %236, %cst_74 [1] : vector<16x16xf32> to vector<16xf32>
    %238 = vector.shape_cast %237 : vector<16xf32> to vector<16x1xf32>
    %239 = vector.broadcast %238 : vector<16x1xf32> to vector<16x16xf32>
    %240 = arith.subf %236, %239 : vector<16x16xf32>
    %241 = math.exp %240 : vector<16x16xf32>
    %cst_75 = arith.constant dense<0.000000e+00> : vector<16xf32>
    %242 = vector.multi_reduction <add>, %241, %cst_75 [1] : vector<16x16xf32> to vector<16xf32>
    %243 = vector.shape_cast %242 : vector<16xf32> to vector<16x1xf32>
    %244 = tpu.reciprocal %243 : vector<16x1xf32> -> vector<16x1xf32>
    %245 = vector.broadcast %244 : vector<16x1xf32> to vector<16x16xf32>
    %246 = arith.mulf %241, %245 : vector<16x16xf32>
    %247 = vector.broadcast %37 : vector<1x32xf32> to vector<16x32xf32>
    %248 = arith.mulf %231, %247 : vector<16x32xf32>
    %cst_76 = arith.constant dense<0.000000e+00> : vector<16x32xf32>
    %249 = tpu.matmul %246, %248, %cst_76 {dimension_numbers = #tpu.dot_dimension_numbers<[1], [0], [0], [1], [0, 0, 1, 1], [], []>} : vector<16x16xf32>, vector<16x32xf32>, vector<16x32xf32> -> vector<16x32xf32>
    %250 = arith.addf %232, %249 : vector<16x32xf32>
    %251 = vector.broadcast %45 : vector<1x32xf32> to vector<16x32xf32>
    %252 = arith.mulf %230, %251 : vector<16x32xf32>
    %cst_77 = arith.constant dense<0.000000e+00> : vector<16x16xf32>
    %253 = tpu.matmul %229, %252, %cst_77 {dimension_numbers = #tpu.dot_dimension_numbers<[1], [1], [0], [0], [0, 0, 1, 0], [], []>} : vector<16x32xf32>, vector<16x32xf32>, vector<16x16xf32> -> vector<16x16xf32>
    %254 = arith.addf %253, %99 : vector<16x16xf32>
    %cst_78 = arith.constant dense<0xFF800000> : vector<16xf32>
    %255 = vector.multi_reduction <maximumf>, %254, %cst_78 [1] : vector<16x16xf32> to vector<16xf32>
    %256 = vector.shape_cast %255 : vector<16xf32> to vector<16x1xf32>
    %257 = vector.broadcast %256 : vector<16x1xf32> to vector<16x16xf32>
    %258 = arith.subf %254, %257 : vector<16x16xf32>
    %259 = math.exp %258 : vector<16x16xf32>
    %cst_79 = arith.constant dense<0.000000e+00> : vector<16xf32>
    %260 = vector.multi_reduction <add>, %259, %cst_79 [1] : vector<16x16xf32> to vector<16xf32>
    %261 = vector.shape_cast %260 : vector<16xf32> to vector<16x1xf32>
    %262 = tpu.reciprocal %261 : vector<16x1xf32> -> vector<16x1xf32>
    %263 = vector.broadcast %262 : vector<16x1xf32> to vector<16x16xf32>
    %264 = arith.mulf %259, %263 : vector<16x16xf32>
    %265 = vector.broadcast %45 : vector<1x32xf32> to vector<16x32xf32>
    %266 = arith.mulf %231, %265 : vector<16x32xf32>
    %cst_80 = arith.constant dense<0.000000e+00> : vector<16x32xf32>
    %267 = tpu.matmul %264, %266, %cst_80 {dimension_numbers = #tpu.dot_dimension_numbers<[1], [0], [0], [1], [0, 0, 1, 1], [], []>} : vector<16x16xf32>, vector<16x32xf32>, vector<16x32xf32> -> vector<16x32xf32>
    %268 = arith.addf %250, %267 : vector<16x32xf32>
    %269 = vector.broadcast %53 : vector<1x32xf32> to vector<16x32xf32>
    %270 = arith.mulf %230, %269 : vector<16x32xf32>
    %cst_81 = arith.constant dense<0.000000e+00> : vector<16x16xf32>
    %271 = tpu.matmul %229, %270, %cst_81 {dimension_numbers = #tpu.dot_dimension_numbers<[1], [1], [0], [0], [0, 0, 1, 0], [], []>} : vector<16x32xf32>, vector<16x32xf32>, vector<16x16xf32> -> vector<16x16xf32>
    %272 = arith.addf %271, %99 : vector<16x16xf32>
    %cst_82 = arith.constant dense<0xFF800000> : vector<16xf32>
    %273 = vector.multi_reduction <maximumf>, %272, %cst_82 [1] : vector<16x16xf32> to vector<16xf32>
    %274 = vector.shape_cast %273 : vector<16xf32> to vector<16x1xf32>
    %275 = vector.broadcast %274 : vector<16x1xf32> to vector<16x16xf32>
    %276 = arith.subf %272, %275 : vector<16x16xf32>
    %277 = math.exp %276 : vector<16x16xf32>
    %cst_83 = arith.constant dense<0.000000e+00> : vector<16xf32>
    %278 = vector.multi_reduction <add>, %277, %cst_83 [1] : vector<16x16xf32> to vector<16xf32>
    %279 = vector.shape_cast %278 : vector<16xf32> to vector<16x1xf32>
    %280 = tpu.reciprocal %279 : vector<16x1xf32> -> vector<16x1xf32>
    %281 = vector.broadcast %280 : vector<16x1xf32> to vector<16x16xf32>
    %282 = arith.mulf %277, %281 : vector<16x16xf32>
    %283 = vector.broadcast %53 : vector<1x32xf32> to vector<16x32xf32>
    %284 = arith.mulf %231, %283 : vector<16x32xf32>
    %cst_84 = arith.constant dense<0.000000e+00> : vector<16x32xf32>
    %285 = tpu.matmul %282, %284, %cst_84 {dimension_numbers = #tpu.dot_dimension_numbers<[1], [0], [0], [1], [0, 0, 1, 1], [], []>} : vector<16x16xf32>, vector<16x32xf32>, vector<16x32xf32> -> vector<16x32xf32>
    %286 = arith.addf %268, %285 : vector<16x32xf32>
    %287 = vector.broadcast %61 : vector<1x32xf32> to vector<16x32xf32>
    %288 = arith.mulf %230, %287 : vector<16x32xf32>
    %cst_85 = arith.constant dense<0.000000e+00> : vector<16x16xf32>
    %289 = tpu.matmul %229, %288, %cst_85 {dimension_numbers = #tpu.dot_dimension_numbers<[1], [1], [0], [0], [0, 0, 1, 0], [], []>} : vector<16x32xf32>, vector<16x32xf32>, vector<16x16xf32> -> vector<16x16xf32>
    %290 = arith.addf %289, %99 : vector<16x16xf32>
    %cst_86 = arith.constant dense<0xFF800000> : vector<16xf32>
    %291 = vector.multi_reduction <maximumf>, %290, %cst_86 [1] : vector<16x16xf32> to vector<16xf32>
    %292 = vector.shape_cast %291 : vector<16xf32> to vector<16x1xf32>
    %293 = vector.broadcast %292 : vector<16x1xf32> to vector<16x16xf32>
    %294 = arith.subf %290, %293 : vector<16x16xf32>
    %295 = math.exp %294 : vector<16x16xf32>
    %cst_87 = arith.constant dense<0.000000e+00> : vector<16xf32>
    %296 = vector.multi_reduction <add>, %295, %cst_87 [1] : vector<16x16xf32> to vector<16xf32>
    %297 = vector.shape_cast %296 : vector<16xf32> to vector<16x1xf32>
    %298 = tpu.reciprocal %297 : vector<16x1xf32> -> vector<16x1xf32>
    %299 = vector.broadcast %298 : vector<16x1xf32> to vector<16x16xf32>
    %300 = arith.mulf %295, %299 : vector<16x16xf32>
    %301 = vector.broadcast %61 : vector<1x32xf32> to vector<16x32xf32>
    %302 = arith.mulf %231, %301 : vector<16x32xf32>
    %cst_88 = arith.constant dense<0.000000e+00> : vector<16x32xf32>
    %303 = tpu.matmul %300, %302, %cst_88 {dimension_numbers = #tpu.dot_dimension_numbers<[1], [0], [0], [1], [0, 0, 1, 1], [], []>} : vector<16x16xf32>, vector<16x32xf32>, vector<16x32xf32> -> vector<16x32xf32>
    %304 = arith.addf %286, %303 : vector<16x32xf32>
    %cst_89 = arith.constant dense<0.000000e+00> : vector<16x32xf32>
    %305 = tpu.matmul %304, %2, %cst_89 {dimension_numbers = #tpu.dot_dimension_numbers<[1], [0], [0], [1], [0, 0, 1, 1], [], []>} : vector<16x32xf32>, vector<32x32xf32>, vector<16x32xf32> -> vector<16x32xf32>
    %306 = arith.addf %305, %10 : vector<16x32xf32>
    %307 = arith.addf %223, %306 : vector<16x32xf32>
    %cst_90 = arith.constant dense<0.000000e+00> : vector<16xf32>
    %308 = vector.multi_reduction <add>, %307, %cst_90 [1] : vector<16x32xf32> to vector<16xf32>
    %309 = vector.shape_cast %308 : vector<16xf32> to vector<16x1xf32>
    %cst_91 = arith.constant 3.200000e+01 : f32
    %310 = vector.broadcast %cst_91 : f32 to vector<16x1xf32>
    %311 = arith.divf %309, %310 : vector<16x1xf32>
    %312 = vector.broadcast %311 : vector<16x1xf32> to vector<16x32xf32>
    %313 = arith.subf %307, %312 : vector<16x32xf32>
    %314 = arith.mulf %313, %313 : vector<16x32xf32>
    %cst_92 = arith.constant dense<0.000000e+00> : vector<16xf32>
    %315 = vector.multi_reduction <add>, %314, %cst_92 [1] : vector<16x32xf32> to vector<16xf32>
    %316 = vector.shape_cast %315 : vector<16xf32> to vector<16x1xf32>
    %cst_93 = arith.constant 3.200000e+01 : f32
    %317 = vector.broadcast %cst_93 : f32 to vector<16x1xf32>
    %318 = arith.divf %316, %317 : vector<16x1xf32>
    %cst_94 = arith.constant 9.99999974E-6 : f32
    %319 = vector.broadcast %cst_94 : f32 to vector<16x1xf32>
    %320 = arith.addf %318, %319 : vector<16x1xf32>
    %321 = math.rsqrt %320 : vector<16x1xf32>
    %322 = vector.broadcast %321 : vector<16x1xf32> to vector<16x32xf32>
    %323 = arith.mulf %313, %322 : vector<16x32xf32>
    %324 = arith.mulf %323, %19 : vector<16x32xf32>
    %325 = arith.addf %324, %22 : vector<16x32xf32>
    %cst_95 = arith.constant dense<0.000000e+00> : vector<16x64xf32>
    %326 = tpu.matmul %325, %3, %cst_95 {dimension_numbers = #tpu.dot_dimension_numbers<[1], [0], [0], [1], [0, 0, 1, 1], [], []>} : vector<16x32xf32>, vector<32x64xf32>, vector<16x64xf32> -> vector<16x64xf32>
    %327 = arith.addf %326, %13 : vector<16x64xf32>
    %cst_96 = arith.constant 0.000000e+00 : f32
    %328 = vector.broadcast %cst_96 : f32 to vector<16x64xf32>
    %329 = arith.maximumf %327, %328 : vector<16x64xf32>
    %cst_97 = arith.constant dense<0.000000e+00> : vector<16x32xf32>
    %330 = tpu.matmul %329, %4, %cst_97 {dimension_numbers = #tpu.dot_dimension_numbers<[1], [0], [0], [1], [0, 0, 1, 1], [], []>} : vector<16x64xf32>, vector<64x32xf32>, vector<16x32xf32> -> vector<16x32xf32>
    %331 = arith.addf %330, %16 : vector<16x32xf32>
    %332 = arith.addf %325, %331 : vector<16x32xf32>
    %cst_98 = arith.constant dense<0.000000e+00> : vector<16xf32>
    %333 = vector.multi_reduction <add>, %332, %cst_98 [1] : vector<16x32xf32> to vector<16xf32>
    %334 = vector.shape_cast %333 : vector<16xf32> to vector<16x1xf32>
    %cst_99 = arith.constant 3.200000e+01 : f32
    %335 = vector.broadcast %cst_99 : f32 to vector<16x1xf32>
    %336 = arith.divf %334, %335 : vector<16x1xf32>
    %337 = vector.broadcast %336 : vector<16x1xf32> to vector<16x32xf32>
    %338 = arith.subf %332, %337 : vector<16x32xf32>
    %339 = arith.mulf %338, %338 : vector<16x32xf32>
    %cst_100 = arith.constant dense<0.000000e+00> : vector<16xf32>
    %340 = vector.multi_reduction <add>, %339, %cst_100 [1] : vector<16x32xf32> to vector<16xf32>
    %341 = vector.shape_cast %340 : vector<16xf32> to vector<16x1xf32>
    %cst_101 = arith.constant 3.200000e+01 : f32
    %342 = vector.broadcast %cst_101 : f32 to vector<16x1xf32>
    %343 = arith.divf %341, %342 : vector<16x1xf32>
    %cst_102 = arith.constant 9.99999974E-6 : f32
    %344 = vector.broadcast %cst_102 : f32 to vector<16x1xf32>
    %345 = arith.addf %343, %344 : vector<16x1xf32>
    %346 = math.rsqrt %345 : vector<16x1xf32>
    %347 = vector.broadcast %346 : vector<16x1xf32> to vector<16x32xf32>
    %348 = arith.mulf %338, %347 : vector<16x32xf32>
    %349 = arith.mulf %348, %25 : vector<16x32xf32>
    %350 = arith.addf %349, %28 : vector<16x32xf32>
    %c1 = arith.constant 1 : index
    %c0_103 = arith.constant 0 : index
    %c0_104 = arith.constant 0 : index
    %351 = vector.load %arg3[%c1, %c0_103, %c0_104] : memref<2x16x32xf32, #tpu.memory_space<vmem>>, vector<1x16x32xf32>
    %352 = vector.shape_cast %351 : vector<1x16x32xf32> to vector<16x32xf32>
    %353 = vector.shape_cast %350 : vector<16x32xf32> to vector<1x16x32xf32>
    tpu.vector_store %arg3[%c1, %c0_103, %c0_104], %353 {strides = array<i32>} : memref<2x16x32xf32, #tpu.memory_space<vmem>>, vector<1x16x32xf32>,
    return
  }
  func.func @transform_0(%arg0: i32) -> (i32, i32) {
    %c0_i32 = arith.constant 0 : i32
    %c0_i32_0 = arith.constant 0 : i32
    %c0_i32_1 = arith.constant 0 : i32
    return %c0_i32, %c0_i32_0 : i32, i32
  }
  func.func @transform_1(%arg0: i32) -> (i32, i32) {
    %c0_i32 = arith.constant 0 : i32
    %c0_i32_0 = arith.constant 0 : i32
    %c0_i32_1 = arith.constant 0 : i32
    return %c0_i32, %c0_i32_0 : i32, i32
  }
  func.func @transform_2(%arg0: i32) -> (i32, i32, i32) {
    %c0_i32 = arith.constant 0 : i32
    %c0_i32_0 = arith.constant 0 : i32
    %c0_i32_1 = arith.constant 0 : i32
    %c0_i32_2 = arith.constant 0 : i32
    return %c0_i32, %c0_i32_0, %c0_i32_1 : i32, i32, i32
  }
}

</mosaic_0001>

<llo_original>
// kernel: transformer_encoder_forward.1
$region0: #{transformer_encoder_forward.1}
  #allocation0 [shape = 'u32[]', space=smem, size = 0x4, offset = 0x4, fixed_abs, tag = 'smem constant byte address 0x4 - core index']
  #allocation1 [shape = 'u32[72,128]{1,0:T(1,128)}', space=vmem, size = 0x9000, scoped, tag = 'internal scratch']
  %s0 = inlined_call_operand.hbm [shape: f32[16,32], index: 0, kind: input, shape index: {}]
  %s1 = inlined_call_operand.hbm [shape: f32[168,128], index: 1, kind: input, shape index: {}]
  %s2 = inlined_call_operand.vmem [shape: f32[2,16,32], index: 2, kind: output, shape index: {}]
  %s3 = sld [smem:[#allocation0]]
  $region26: #{transformer_encoder_forward.1} parent=0
    _
  %s5 = ssub.s32 1, %s3
  %s6 = scalar_select 0, %s5, %s3
  $region1: #{transformer_encoder_forward.1} parent=0
    #allocation2 [shape = 'u8[8192]{0}', space=vmem, size = 0x2000, scoped, tag = 'input window, operand 0, single buffered']
    #allocation3 [shape = 's32[1]{0}', space=sflag, size = 0x4, scoped, tag = 'scoped memory for transformer_encoder_forward.1']
    #allocation4 [shape = 'u8[86016]{0}', space=vmem, size = 0x15000, scoped, tag = 'input window, operand 1, single buffered']
    #allocation5 [shape = 's32[1]{0}', space=sflag, size = 0x4, scoped, tag = 'scoped memory for transformer_encoder_forward.1']
    %7 = vsyncpa [#allocation3], 0
    %8 = vsyncpa [#allocation5], 0
    // Predicated region
    $region2: #{transformer_encoder_forward.1} parent=1 // pred_check
      _
    $region3: #{transformer_encoder_forward.1} parent=1 // pred_check_branch
      %10 = sbr.rel (0) target = $region5
    $region4: #{transformer_encoder_forward.1} parent=1 // pred_region
      %12 = vsyncadd [#allocation3], 0
      %s13 = sshll.u32 %s0, 4
      %s14 = int_to_ptr.hbm [resolvable:$true] %s13
      %s15 = sshll.u32 [#allocation2], 4
      %s16 = int_to_ptr.vmem [resolvable:$true] %s15
      %21 = dma.hbm_to_vmem [thread:$0]  %s14, 256, %s16, [#allocation3], 128, 128, 8
    $region5: #{transformer_encoder_forward.1} parent=1 // pred_fallthru
      _
    // Predicated region
    $region6: #{transformer_encoder_forward.1} parent=1 // pred_check
      _
    $region7: #{transformer_encoder_forward.1} parent=1 // pred_check_branch
      %23 = sbr.rel (0) target = $region9
    $region8: #{transformer_encoder_forward.1} parent=1 // pred_region
      %25 = vsyncadd [#allocation5], 0
      %s26 = sshll.u32 %s1, 4
      %s27 = int_to_ptr.hbm [resolvable:$true] %s26
      %s28 = sshll.u32 [#allocation4], 4
      %s29 = int_to_ptr.vmem [resolvable:$true] %s28
      %34 = dma.hbm_to_vmem [thread:$0]  %s27, 2688, %s29, [#allocation5], 128, 128, 8
    $region9: #{transformer_encoder_forward.1} parent=1 // pred_fallthru
      _
    // Predicated region
    $region10: #{transformer_encoder_forward.1} parent=1 // pred_check
      _
    $region11: #{transformer_encoder_forward.1} parent=1 // pred_check_branch
      %36 = sbr.rel (0) target = $region13
    $region12: #{transformer_encoder_forward.1} parent=1 // pred_region
      %38 = dma.done [#allocation3], 256
    $region13: #{transformer_encoder_forward.1} parent=1 // pred_fallthru
      _
    // Predicated region
    $region14: #{transformer_encoder_forward.1} parent=1 // pred_check
      _
    $region15: #{transformer_encoder_forward.1} parent=1 // pred_check_branch
      %40 = sbr.rel (0) target = $region17
    $region16: #{transformer_encoder_forward.1} parent=1 // pred_region
      %42 = dma.done [#allocation5], 2688
    $region17: #{transformer_encoder_forward.1} parent=1 // pred_fallthru
      _
    %v43 = vld [vmem:[#allocation2] sm:$0xff]
    %v44 = vld [vmem:[#allocation2 + $0x8] sm:$0xff]
    %v45 = vld [vmem:[#allocation4] sm:$0xff]
    %v46 = vld [vmem:[#allocation4 + $0x8] sm:$0xff]
    %v47 = vld [vmem:[#allocation4 + $0x10] sm:$0xff]
    %v48 = vld [vmem:[#allocation4 + $0x18] sm:$0xff]
    %v49 = vld [vmem:[#allocation4 + $0x20] sm:$0xff]
    %v50 = vld [vmem:[#allocation4 + $0x28] sm:$0xff]
    %v51 = vld [vmem:[#allocation4 + $0x30] sm:$0xff]
    %v52 = vld [vmem:[#allocation4 + $0x38] sm:$0xff]
    %v53 = vld [vmem:[#allocation4 + $0x40] sm:$0xff]
    %v54 = vld [vmem:[#allocation4 + $0x48] sm:$0xff]
    %v55 = vld [vmem:[#allocation4 + $0x50] sm:$0xff]
    %v56 = vld [vmem:[#allocation4 + $0x58] sm:$0xff]
    %v57 = vld [vmem:[#allocation4 + $0x60] sm:$0xff]
    %v58 = vld [vmem:[#allocation4 + $0x68] sm:$0xff]
    %v59 = vld [vmem:[#allocation4 + $0x70] sm:$0xff]
    %v60 = vld [vmem:[#allocation4 + $0x78] sm:$0xff]
    %v61 = vld [vmem:[#allocation4 + $0x80] sm:$0xff]
    %v62 = vld [vmem:[#allocation4 + $0x88] sm:$0xff]
    %v63 = vld [vmem:[#allocation4 + $0x90] sm:$0xff]
    %v64 = vld [vmem:[#allocation4 + $0x98] sm:$0xff]
    %v65 = vld [vmem:[#allocation4 + $0xa0] sm:$0x1]
    %v66 = vperm.slane %v65, 0
    %v67 = vld [vmem:[#allocation4 + $0xa1] sm:$0x1]
    %v68 = vperm.slane %v67, 0
    %v69 = vld [vmem:[#allocation4 + $0xa2] sm:$0x1]
    %v70 = vperm.slane %v69, 0
    %v71 = vld [vmem:[#allocation4 + $0xa3] sm:$0x1]
    %v72 = vperm.slane %v71, 0
    %v73 = vld [vmem:[#allocation4 + $0xa4] sm:$0x1]
    %v74 = vperm.slane %v73, 0
    %v75 = vld [vmem:[#allocation4 + $0xa5] sm:$0x1]
    %v76 = vperm.slane %v75, 0
    %v77 = vld [vmem:[#allocation4 + $0xa6] sm:$0x1]
    %v78 = vperm.slane %v77, 0
    %v79 = vld [vmem:[#allocation4 + $0xa7] sm:$0x1]
    %v80 = vperm.slane %v79, 0
    %v81 = vlaneseq
    %v82 = vand.u32 %v81, 127
    %vm83 = vcmp.ge.s32.totalorder %v82, 0
    %vm84 = vcmp.lt.s32.totalorder %v82, 8
    %vm85 = vmand %vm83, %vm84
    %v86 = vsel %vm85, 1.0, 0.0
    %vm87 = vcmp.ge.s32.totalorder %v82, 8
    %vm88 = vcmp.lt.s32.totalorder %v82, 16
    %vm89 = vmand %vm87, %vm88
    %v90 = vsel %vm89, 1.0, 0.0
    %vm91 = vcmp.ge.s32.totalorder %v82, 16
    %vm92 = vcmp.lt.s32.totalorder %v82, 24
    %vm93 = vmand %vm91, %vm92
    %v94 = vsel %vm93, 1.0, 0.0
    %vm95 = vcmp.ge.s32.totalorder %v82, 24
    %vm96 = vcmp.lt.s32.totalorder %v82, 32
    %vm97 = vmand %vm95, %vm96
    %v98 = vsel %vm97, 1.0, 0.0
    %v99 = vlaneseq
    %v100 = vshrl.u32 %v99, 7
    %v101 = vadd.s32 %v100, 8
    %vm102 = vcmp.lt.s32.totalorder %v100, 0
    %v103 = vsub.s32 0, %v100
    %v104 = vsel %vm102, %v103, %v100
    %v105 = vshrl.u32 %v104, 1
    %v106 = vand.u32 %v104, 1
    %v107 = vsub.s32 0, %v106
    %v108 = vsel %vm102, %v107, %v106
    %vm109 = vcmp.lt.s32.totalorder %v101, 0
    %v110 = vsub.s32 0, %v101
    %v111 = vsel %vm109, %v110, %v101
    %v112 = vshrl.u32 %v111, 1
    %v113 = vand.u32 %v111, 1
    %v114 = vsub.s32 0, %v113
    %v115 = vsel %vm109, %v114, %v113
    %vm116 = vcmp.ne.s32.totalorder %v108, 0
    %vm117 = vcmp.ne.s32.totalorder %v115, 0
    %vm118 = vcmp.lt.s32.totalorder %v108, 0
    %vm119 = vcmp.lt.s32.totalorder %v115, 0
    %vm120 = vmand %vm118, %vm116
    %vm121 = vmand %vm119, %vm117
    %v122 = vadd.s32 %v108, 2
    %v123 = vadd.s32 %v115, 2
    %v124 = vsel %vm120, %v122, %v108
    %v125 = vsel %vm121, %v123, %v115
    %vm126 = vcmp.lt.s32.totalorder %v82, 0
    %v127 = vsub.s32 0, %v82
    %v128 = vsel %vm126, %v127, %v82
    %v129 = vshrl.u32 %v128, 1
    %v130 = vand.u32 %v128, 1
    %v131 = vsub.s32 0, %v130
    %v132 = vsel %vm126, %v131, %v130
    %vm133 = vcmp.ne.s32.totalorder %v132, 0
    %vm134 = vcmp.lt.s32.totalorder %v132, 0
    %vm135 = vmand %vm134, %vm133
    %v136 = vadd.s32 %v132, 2
    %v137 = vsel %vm135, %v136, %v132
    %vm138 = vcmp.eq.s32.totalorder %v124, %v137
    %vm139 = vcmp.eq.s32.totalorder %v125, %v137
    %v140 = vsel %vm138, 0.0, -1e+30
    %v141 = vsel %vm139, 0.0, -1e+30
    %vm142 = vcmask 261120
    %v144 = vsel %vm142, %v43, 0
    %v147 = vsel %vm142, %v44, 0
    %149 = vmatpush.msra.mxu0 0.0
    %150 = vmatpush.msra.mxu0 0.0
    %151 = vmatpush.msra.mxu0 0.0
    %152 = vmatpush.msra.mxu0 0.0
    %153 = vmatpush.msra.mxu0 0.0
    %154 = vmatpush.msra.mxu0 0.0
    %155 = vmatpush.msra.mxu0 0.0
    %156 = vmatpush.msra.mxu0 0.0
    %157 = vmatpush.msra.mxu0 0.0
    %158 = vmatpush.msra.mxu0 0.0
    %159 = vmatpush.msra.mxu0 0.0
    %160 = vmatpush.msra.mxu0 0.0
    %161 = vmatpush.msra.mxu0 %v48
    %162 = vmatpush.msra.mxu0 %v47
    %163 = vmatpush.msra.mxu0 %v46
    %164 = vmatpush.msra.mxu0 %v45
    %165 = vmatmul.f32.gmra.mxu0 %v144
    %v166 = vpop.f32.mrf.mxu0
    %v167 = vadd.f32 %v66, %v166
    %168 = vmatmul.f32.gmra.mxu0 %v147
    %v169 = vpop.f32.mrf.mxu0
    %v170 = vadd.f32 %v66, %v169
    %171 = vdwg.mxu0
    %173 = vrot.lane.b32.xlu0 %v86, 32
    %v174 = vpop.permute.xlu0 %173
    %v176 = vmul.f32 %v167, %v174
    %v177 = vmul.f32 %v170, %v174
    %180 = vrot.lane.b32.xlu0 %v176, 96
    %v181 = vpop.permute.xlu0 %180
    %182 = vrot.lane.b32.xlu0 %v177, 96
    %v183 = vpop.permute.xlu0 %182
    %v185 = vsel %vm142, %v167, 0
    %v188 = vsel %vm142, %v170, 0
    %v190 = vsel %vm142, %v181, 0
    %v192 = vsel %vm142, %v183, 0
    %194 = vmatpush.xpose.msra.mxu0 0.0
    %195 = vmatpush.xpose.msra.mxu0 0.0
    %196 = vmatpush.xpose.msra.mxu0 0.0
    %197 = vmatpush.xpose.msra.mxu0 0.0
    %198 = vmatpush.xpose.msra.mxu0 0.0
    %199 = vmatpush.xpose.msra.mxu0 0.0
    %200 = vmatpush.xpose.msra.mxu0 0.0
    %201 = vmatpush.xpose.msra.mxu0 0.0
    %202 = vmatpush.xpose.msra.mxu0 0.0
    %203 = vmatpush.xpose.msra.mxu0 0.0
    %204 = vmatpush.xpose.msra.mxu0 0.0
    %205 = vmatpush.xpose.msra.mxu0 0.0
    %206 = vmatpush.xpose.msra.mxu0 0.0
    %207 = vmatpush.xpose.msra.mxu0 0.0
    %208 = vmatpush.xpose.msra.mxu0 %v192
    %209 = vmatpush.xpose.msra.mxu0 %v190
    %210 = vmatmul.f32.gmra.mxu0 %v185
    %v211 = vpop.f32.mrf.mxu0
    %v212 = vadd.f32 %v140, %v211
    %213 = vmatmul.f32.gmra.mxu0 %v188
    %v214 = vpop.f32.mrf.mxu0
    %v215 = vadd.f32 %v141, %v214
    %216 = vdwg.mxu0
    %vm217 = vcmask 130048
    %v218 = vsel %vm217, %v212, -inf
    %219 = vmax.xlane.f32.xlu0 %v218
    %v220 = vpop.xlane.xlu0 %219
    %v221 = vsel %vm217, %v215, -inf
    %222 = vmax.xlane.f32.xlu0 %v221
    %v223 = vpop.xlane.xlu0 %222
    %v224 = vsub.f32 %v212, %v220
    %v225 = vsub.f32 %v215, %v223
    %v226 = vmul.f32 %v224, 1.442695
    %v227 = vpow.pop %v226
    %v228 = vmul.f32 %v225, 1.442695
    %v229 = vpow.pop %v228
    %v230 = vsel %vm217, %v227, 0.0
    %231 = vadd.xlane.f32.xlu0 %v230
    %v232 = vpop.xlane.xlu0 %231
    %v233 = vsel %vm217, %v229, 0.0
    %234 = vadd.xlane.f32.xlu0 %v233
    %v235 = vpop.xlane.xlu0 %234
    %v236 = vrcp.pop %v232
    %v237 = vmul.f32 %v232, %v236
    %v238 = vsub.f32 1.0, %v237
    %v239 = vmul.f32 %v236, %v238
    %v240 = vadd.f32 %v236, %v239
    %vm241 = vweird.f32 %v232
    %vm242 = vweird.f32 %v236
    %vm243 = vmor %vm241, %vm242
    %v244 = vsel %vm243, %v236, %v240
    %v245 = vand.u32 2147483647, %v232
    %vm246 = vcmp.eq.f32.partialorder %v245, 8.507059e+37
    %v247 = vand.u32 %v232, 2147483648
    %v248 = vor.u32 1.1754944e-38, %v247
    %v249 = vsel %vm246, %v248, %v244
    %v250 = vrcp.pop %v235
    %v251 = vmul.f32 %v235, %v250
    %v252 = vsub.f32 1.0, %v251
    %v253 = vmul.f32 %v250, %v252
    %v254 = vadd.f32 %v250, %v253
    %vm255 = vweird.f32 %v235
    %vm256 = vweird.f32 %v250
    %vm257 = vmor %vm255, %vm256
    %v258 = vsel %vm257, %v250, %v254
    %v259 = vand.u32 2147483647, %v235
    %vm260 = vcmp.eq.f32.partialorder %v259, 8.507059e+37
    %v261 = vand.u32 %v235, 2147483648
    %v262 = vor.u32 1.1754944e-38, %v261
    %v263 = vsel %vm260, %v262, %v258
    %v264 = vmul.f32 %v227, %v249
    %v265 = vmul.f32 %v229, %v263
    %266 = vrot.lane.b32.xlu0 %v86, 64
    %v267 = vpop.permute.xlu0 %266
    %v269 = vmul.f32 %v167, %v267
    %v270 = vmul.f32 %v170, %v267
    %272 = vrot.lane.b32.xlu0 %v90, 32
    %v273 = vpop.permute.xlu0 %272
    %v275 = vmul.f32 %v167, %v273
    %v276 = vmul.f32 %v170, %v273
    %279 = vrot.lane.b32.xlu0 %v275, 96
    %v280 = vpop.permute.xlu0 %279
    %281 = vrot.lane.b32.xlu0 %v276, 96
    %v282 = vpop.permute.xlu0 %281
    %v283 = vsel %vm142, %v280, 0
    %v285 = vsel %vm142, %v282, 0
    %287 = vmatpush.xpose.msra.mxu0 0.0
    %288 = vmatpush.xpose.msra.mxu0 0.0
    %289 = vmatpush.xpose.msra.mxu0 0.0
    %290 = vmatpush.xpose.msra.mxu0 0.0
    %291 = vmatpush.xpose.msra.mxu0 0.0
    %292 = vmatpush.xpose.msra.mxu0 0.0
    %293 = vmatpush.xpose.msra.mxu0 0.0
    %294 = vmatpush.xpose.msra.mxu0 0.0
    %295 = vmatpush.xpose.msra.mxu0 0.0
    %296 = vmatpush.xpose.msra.mxu0 0.0
    %297 = vmatpush.xpose.msra.mxu0 0.0
    %298 = vmatpush.xpose.msra.mxu0 0.0
    %299 = vmatpush.xpose.msra.mxu0 0.0
    %300 = vmatpush.xpose.msra.mxu0 0.0
    %301 = vmatpush.xpose.msra.mxu0 %v285
    %302 = vmatpush.xpose.msra.mxu0 %v283
    %303 = vmatmul.f32.gmra.mxu0 %v185
    %v304 = vpop.f32.mrf.mxu0
    %v305 = vadd.f32 %v140, %v304
    %306 = vmatmul.f32.gmra.mxu0 %v188
    %v307 = vpop.f32.mrf.mxu0
    %v308 = vadd.f32 %v141, %v307
    %309 = vdwg.mxu0
    %v310 = vsel %vm217, %v305, -inf
    %311 = vmax.xlane.f32.xlu0 %v310
    %v312 = vpop.xlane.xlu0 %311
    %v313 = vsel %vm217, %v308, -inf
    %314 = vmax.xlane.f32.xlu0 %v313
    %v315 = vpop.xlane.xlu0 %314
    %v316 = vsub.f32 %v305, %v312
    %v317 = vsub.f32 %v308, %v315
    %v318 = vmul.f32 %v316, 1.442695
    %v319 = vpow.pop %v318
    %v320 = vmul.f32 %v317, 1.442695
    %v321 = vpow.pop %v320
    %v322 = vsel %vm217, %v319, 0.0
    %323 = vadd.xlane.f32.xlu0 %v322
    %v324 = vpop.xlane.xlu0 %323
    %v325 = vsel %vm217, %v321, 0.0
    %326 = vadd.xlane.f32.xlu0 %v325
    %v327 = vpop.xlane.xlu0 %326
    %v328 = vrcp.pop %v324
    %v329 = vmul.f32 %v324, %v328
    %v330 = vsub.f32 1.0, %v329
    %v331 = vmul.f32 %v328, %v330
    %v332 = vadd.f32 %v328, %v331
    %vm333 = vweird.f32 %v324
    %vm334 = vweird.f32 %v328
    %vm335 = vmor %vm333, %vm334
    %v336 = vsel %vm335, %v328, %v332
    %v337 = vand.u32 2147483647, %v324
    %vm338 = vcmp.eq.f32.partialorder %v337, 8.507059e+37
    %v339 = vand.u32 %v324, 2147483648
    %v340 = vor.u32 1.1754944e-38, %v339
    %v341 = vsel %vm338, %v340, %v336
    %v342 = vrcp.pop %v327
    %v343 = vmul.f32 %v327, %v342
    %v344 = vsub.f32 1.0, %v343
    %v345 = vmul.f32 %v342, %v344
    %v346 = vadd.f32 %v342, %v345
    %vm347 = vweird.f32 %v327
    %vm348 = vweird.f32 %v342
    %vm349 = vmor %vm347, %vm348
    %v350 = vsel %vm349, %v342, %v346
    %v351 = vand.u32 2147483647, %v327
    %vm352 = vcmp.eq.f32.partialorder %v351, 8.507059e+37
    %v353 = vand.u32 %v327, 2147483648
    %v354 = vor.u32 1.1754944e-38, %v353
    %v355 = vsel %vm352, %v354, %v350
    %v356 = vmul.f32 %v319, %v341
    %v357 = vmul.f32 %v321, %v355
    %358 = vrot.lane.b32.xlu0 %v90, 64
    %v359 = vpop.permute.xlu0 %358
    %v361 = vmul.f32 %v167, %v359
    %v362 = vmul.f32 %v170, %v359
    %365 = vrot.lane.b32.xlu0 %v361, 64
    %v366 = vpop.permute.xlu0 %365
    %367 = vrot.lane.b32.xlu0 %v362, 64
    %v368 = vpop.permute.xlu0 %367
    %v372 = vsel %vm217, %v356, 0
    %v375 = vsel %vm217, %v357, 0
    %377 = vmatpush.msra.mxu0 0.0
    %378 = vmatpush.msra.mxu0 0.0
    %379 = vmatpush.msra.mxu0 0.0
    %380 = vmatpush.msra.mxu0 0.0
    %381 = vmatpush.msra.mxu0 0.0
    %382 = vmatpush.msra.mxu0 0.0
    %383 = vmatpush.msra.mxu0 0.0
    %384 = vmatpush.msra.mxu0 0.0
    %385 = vmatpush.msra.mxu0 0.0
    %386 = vmatpush.msra.mxu0 0.0
    %387 = vmatpush.msra.mxu0 0.0
    %388 = vmatpush.msra.mxu0 0.0
    %389 = vmatpush.msra.mxu0 0.0
    %390 = vmatpush.msra.mxu0 0.0
    %391 = vmatpush.msra.mxu0 %v368
    %392 = vmatpush.msra.mxu0 %v366
    %393 = vmatmul.f32.gmra.mxu0 %v372
    %v394 = vpop.f32.mrf.mxu0
    %v395 = vadd.f32 0.0, %v394
    %396 = vmatmul.f32.gmra.mxu0 %v375
    %v397 = vpop.f32.mrf.mxu0
    %v398 = vadd.f32 0.0, %v397
    %399 = vdwg.mxu0
    %402 = vrot.lane.b32.xlu0 %v269, 64
    %v403 = vpop.permute.xlu0 %402
    %404 = vrot.lane.b32.xlu0 %v270, 64
    %v405 = vpop.permute.xlu0 %404
    %v409 = vsel %vm217, %v264, 0
    %v412 = vsel %vm217, %v265, 0
    %414 = vmatpush.msra.mxu0 0.0
    %415 = vmatpush.msra.mxu0 0.0
    %416 = vmatpush.msra.mxu0 0.0
    %417 = vmatpush.msra.mxu0 0.0
    %418 = vmatpush.msra.mxu0 0.0
    %419 = vmatpush.msra.mxu0 0.0
    %420 = vmatpush.msra.mxu0 0.0
    %421 = vmatpush.msra.mxu0 0.0
    %422 = vmatpush.msra.mxu0 0.0
    %423 = vmatpush.msra.mxu0 0.0
    %424 = vmatpush.msra.mxu0 0.0
    %425 = vmatpush.msra.mxu0 0.0
    %426 = vmatpush.msra.mxu0 0.0
    %427 = vmatpush.msra.mxu0 0.0
    %428 = vmatpush.msra.mxu0 %v405
    %429 = vmatpush.msra.mxu0 %v403
    %430 = vmatmul.f32.gmra.mxu0 %v409
    %v431 = vpop.f32.mrf.mxu0
    %v432 = vadd.f32 %v395, %v431
    %433 = vmatmul.f32.gmra.mxu0 %v412
    %v434 = vpop.f32.mrf.mxu0
    %v435 = vadd.f32 %v398, %v434
    %436 = vdwg.mxu0
    %438 = vrot.lane.b32.xlu0 %v94, 32
    %v439 = vpop.permute.xlu0 %438
    %v441 = vmul.f32 %v167, %v439
    %v442 = vmul.f32 %v170, %v439
    %445 = vrot.lane.b32.xlu0 %v441, 96
    %v446 = vpop.permute.xlu0 %445
    %447 = vrot.lane.b32.xlu0 %v442, 96
    %v448 = vpop.permute.xlu0 %447
    %v449 = vsel %vm142, %v446, 0
    %v451 = vsel %vm142, %v448, 0
    %453 = vmatpush.xpose.msra.mxu0 0.0
    %454 = vmatpush.xpose.msra.mxu0 0.0
    %455 = vmatpush.xpose.msra.mxu0 0.0
    %456 = vmatpush.xpose.msra.mxu0 0.0
    %457 = vmatpush.xpose.msra.mxu0 0.0
    %458 = vmatpush.xpose.msra.mxu0 0.0
    %459 = vmatpush.xpose.msra.mxu0 0.0
    %460 = vmatpush.xpose.msra.mxu0 0.0
    %461 = vmatpush.xpose.msra.mxu0 0.0
    %462 = vmatpush.xpose.msra.mxu0 0.0
    %463 = vmatpush.xpose.msra.mxu0 0.0
    %464 = vmatpush.xpose.msra.mxu0 0.0
    %465 = vmatpush.xpose.msra.mxu0 0.0
    %466 = vmatpush.xpose.msra.mxu0 0.0
    %467 = vmatpush.xpose.msra.mxu0 %v451
    %468 = vmatpush.xpose.msra.mxu0 %v449
    %469 = vmatmul.f32.gmra.mxu0 %v185
    %v470 = vpop.f32.mrf.mxu0
    %v471 = vadd.f32 %v140, %v470
    %472 = vmatmul.f32.gmra.mxu0 %v188
    %v473 = vpop.f32.mrf.mxu0
    %v474 = vadd.f32 %v141, %v473
    %475 = vdwg.mxu0
    %v476 = vsel %vm217, %v471, -inf
    %477 = vmax.xlane.f32.xlu0 %v476
    %v478 = vpop.xlane.xlu0 %477
    %v479 = vsel %vm217, %v474, -inf
    %480 = vmax.xlane.f32.xlu0 %v479
    %v481 = vpop.xlane.xlu0 %480
    %v482 = vsub.f32 %v471, %v478
    %v483 = vsub.f32 %v474, %v481
    %v484 = vmul.f32 %v482, 1.442695
    %v485 = vpow.pop %v484
    %v486 = vmul.f32 %v483, 1.442695
    %v487 = vpow.pop %v486
    %v488 = vsel %vm217, %v485, 0.0
    %489 = vadd.xlane.f32.xlu0 %v488
    %v490 = vpop.xlane.xlu0 %489
    %v491 = vsel %vm217, %v487, 0.0
    %492 = vadd.xlane.f32.xlu0 %v491
    %v493 = vpop.xlane.xlu0 %492
    %v494 = vrcp.pop %v490
    %v495 = vmul.f32 %v490, %v494
    %v496 = vsub.f32 1.0, %v495
    %v497 = vmul.f32 %v494, %v496
    %v498 = vadd.f32 %v494, %v497
    %vm499 = vweird.f32 %v490
    %vm500 = vweird.f32 %v494
    %vm501 = vmor %vm499, %vm500
    %v502 = vsel %vm501, %v494, %v498
    %v503 = vand.u32 2147483647, %v490
    %vm504 = vcmp.eq.f32.partialorder %v503, 8.507059e+37
    %v505 = vand.u32 %v490, 2147483648
    %v506 = vor.u32 1.1754944e-38, %v505
    %v507 = vsel %vm504, %v506, %v502
    %v508 = vrcp.pop %v493
    %v509 = vmul.f32 %v493, %v508
    %v510 = vsub.f32 1.0, %v509
    %v511 = vmul.f32 %v508, %v510
    %v512 = vadd.f32 %v508, %v511
    %vm513 = vweird.f32 %v493
    %vm514 = vweird.f32 %v508
    %vm515 = vmor %vm513, %vm514
    %v516 = vsel %vm515, %v508, %v512
    %v517 = vand.u32 2147483647, %v493
    %vm518 = vcmp.eq.f32.partialorder %v517, 8.507059e+37
    %v519 = vand.u32 %v493, 2147483648
    %v520 = vor.u32 1.1754944e-38, %v519
    %v521 = vsel %vm518, %v520, %v516
    %v522 = vmul.f32 %v485, %v507
    %v523 = vmul.f32 %v487, %v521
    %524 = vrot.lane.b32.xlu0 %v94, 64
    %v525 = vpop.permute.xlu0 %524
    %v527 = vmul.f32 %v167, %v525
    %v528 = vmul.f32 %v170, %v525
    %531 = vrot.lane.b32.xlu0 %v527, 64
    %v532 = vpop.permute.xlu0 %531
    %533 = vrot.lane.b32.xlu0 %v528, 64
    %v534 = vpop.permute.xlu0 %533
    %v538 = vsel %vm217, %v522, 0
    %v541 = vsel %vm217, %v523, 0
    %543 = vmatpush.msra.mxu0 0.0
    %544 = vmatpush.msra.mxu0 0.0
    %545 = vmatpush.msra.mxu0 0.0
    %546 = vmatpush.msra.mxu0 0.0
    %547 = vmatpush.msra.mxu0 0.0
    %548 = vmatpush.msra.mxu0 0.0
    %549 = vmatpush.msra.mxu0 0.0
    %550 = vmatpush.msra.mxu0 0.0
    %551 = vmatpush.msra.mxu0 0.0
    %552 = vmatpush.msra.mxu0 0.0
    %553 = vmatpush.msra.mxu0 0.0
    %554 = vmatpush.msra.mxu0 0.0
    %555 = vmatpush.msra.mxu0 0.0
    %556 = vmatpush.msra.mxu0 0.0
    %557 = vmatpush.msra.mxu0 %v534
    %558 = vmatpush.msra.mxu0 %v532
    %559 = vmatmul.f32.gmra.mxu0 %v538
    %v560 = vpop.f32.mrf.mxu0
    %v561 = vadd.f32 0.0, %v560
    %562 = vmatmul.f32.gmra.mxu0 %v541
    %v563 = vpop.f32.mrf.mxu0
    %v564 = vadd.f32 0.0, %v563
    %565 = vdwg.mxu0
    %v566 = vadd.f32 %v432, %v561
    %v567 = vadd.f32 %v435, %v564
    %569 = vrot.lane.b32.xlu0 %v98, 32
    %v570 = vpop.permute.xlu0 %569
    %v572 = vmul.f32 %v167, %v570
    %v573 = vmul.f32 %v170, %v570
    %576 = vrot.lane.b32.xlu0 %v572, 96
    %v577 = vpop.permute.xlu0 %576
    %578 = vrot.lane.b32.xlu0 %v573, 96
    %v579 = vpop.permute.xlu0 %578
    %v580 = vsel %vm142, %v577, 0
    %v582 = vsel %vm142, %v579, 0
    %584 = vmatpush.xpose.msra.mxu0 0.0
    %585 = vmatpush.xpose.msra.mxu0 0.0
    %586 = vmatpush.xpose.msra.mxu0 0.0
    %587 = vmatpush.xpose.msra.mxu0 0.0
    %588 = vmatpush.xpose.msra.mxu0 0.0
    %589 = vmatpush.xpose.msra.mxu0 0.0
    %590 = vmatpush.xpose.msra.mxu0 0.0
    %591 = vmatpush.xpose.msra.mxu0 0.0
    %592 = vmatpush.xpose.msra.mxu0 0.0
    %593 = vmatpush.xpose.msra.mxu0 0.0
    %594 = vmatpush.xpose.msra.mxu0 0.0
    %595 = vmatpush.xpose.msra.mxu0 0.0
    %596 = vmatpush.xpose.msra.mxu0 0.0
    %597 = vmatpush.xpose.msra.mxu0 0.0
    %598 = vmatpush.xpose.msra.mxu0 %v582
    %599 = vmatpush.xpose.msra.mxu0 %v580
    %600 = vmatmul.f32.gmra.mxu0 %v185
    %v601 = vpop.f32.mrf.mxu0
    %v602 = vadd.f32 %v140, %v601
    %603 = vmatmul.f32.gmra.mxu0 %v188
    %v604 = vpop.f32.mrf.mxu0
    %v605 = vadd.f32 %v141, %v604
    %606 = vdwg.mxu0
    %v607 = vsel %vm217, %v602, -inf
    %608 = vmax.xlane.f32.xlu0 %v607
    %v609 = vpop.xlane.xlu0 %608
    %v610 = vsel %vm217, %v605, -inf
    %611 = vmax.xlane.f32.xlu0 %v610
    %v612 = vpop.xlane.xlu0 %611
    %v613 = vsub.f32 %v602, %v609
    %v614 = vsub.f32 %v605, %v612
    %v615 = vmul.f32 %v613, 1.442695
    %v616 = vpow.pop %v615
    %v617 = vmul.f32 %v614, 1.442695
    %v618 = vpow.pop %v617
    %v619 = vsel %vm217, %v616, 0.0
    %620 = vadd.xlane.f32.xlu0 %v619
    %v621 = vpop.xlane.xlu0 %620
    %v622 = vsel %vm217, %v618, 0.0
    %623 = vadd.xlane.f32.xlu0 %v622
    %v624 = vpop.xlane.xlu0 %623
    %v625 = vrcp.pop %v621
    %v626 = vmul.f32 %v621, %v625
    %v627 = vsub.f32 1.0, %v626
    %v628 = vmul.f32 %v625, %v627
    %v629 = vadd.f32 %v625, %v628
    %vm630 = vweird.f32 %v621
    %vm631 = vweird.f32 %v625
    %vm632 = vmor %vm630, %vm631
    %v633 = vsel %vm632, %v625, %v629
    %v634 = vand.u32 2147483647, %v621
    %vm635 = vcmp.eq.f32.partialorder %v634, 8.507059e+37
    %v636 = vand.u32 %v621, 2147483648
    %v637 = vor.u32 1.1754944e-38, %v636
    %v638 = vsel %vm635, %v637, %v633
    %v639 = vrcp.pop %v624
    %v640 = vmul.f32 %v624, %v639
    %v641 = vsub.f32 1.0, %v640
    %v642 = vmul.f32 %v639, %v641
    %v643 = vadd.f32 %v639, %v642
    %vm644 = vweird.f32 %v624
    %vm645 = vweird.f32 %v639
    %vm646 = vmor %vm644, %vm645
    %v647 = vsel %vm646, %v639, %v643
    %v648 = vand.u32 2147483647, %v624
    %vm649 = vcmp.eq.f32.partialorder %v648, 8.507059e+37
    %v650 = vand.u32 %v624, 2147483648
    %v651 = vor.u32 1.1754944e-38, %v650
    %v652 = vsel %vm649, %v651, %v647
    %v653 = vmul.f32 %v616, %v638
    %v654 = vmul.f32 %v618, %v652
    %655 = vrot.lane.b32.xlu0 %v98, 64
    %v656 = vpop.permute.xlu0 %655
    %v658 = vmul.f32 %v167, %v656
    %v659 = vmul.f32 %v170, %v656
    %662 = vrot.lane.b32.xlu0 %v658, 64
    %v663 = vpop.permute.xlu0 %662
    %664 = vrot.lane.b32.xlu0 %v659, 64
    %v665 = vpop.permute.xlu0 %664
    %v669 = vsel %vm217, %v653, 0
    %v672 = vsel %vm217, %v654, 0
    %674 = vmatpush.msra.mxu0 0.0
    %675 = vmatpush.msra.mxu0 0.0
    %676 = vmatpush.msra.mxu0 0.0
    %677 = vmatpush.msra.mxu0 0.0
    %678 = vmatpush.msra.mxu0 0.0
    %679 = vmatpush.msra.mxu0 0.0
    %680 = vmatpush.msra.mxu0 0.0
    %681 = vmatpush.msra.mxu0 0.0
    %682 = vmatpush.msra.mxu0 0.0
    %683 = vmatpush.msra.mxu0 0.0
    %684 = vmatpush.msra.mxu0 0.0
    %685 = vmatpush.msra.mxu0 0.0
    %686 = vmatpush.msra.mxu0 0.0
    %687 = vmatpush.msra.mxu0 0.0
    %688 = vmatpush.msra.mxu0 %v665
    %689 = vmatpush.msra.mxu0 %v663
    %690 = vmatmul.f32.gmra.mxu0 %v669
    %v691 = vpop.f32.mrf.mxu0
    %v692 = vadd.f32 0.0, %v691
    %693 = vmatmul.f32.gmra.mxu0 %v672
    %v694 = vpop.f32.mrf.mxu0
    %v695 = vadd.f32 0.0, %v694
    %696 = vdwg.mxu0
    %v697 = vadd.f32 %v566, %v692
    %v698 = vadd.f32 %v567, %v695
    %v700 = vsel %vm142, %v697, 0
    %v703 = vsel %vm142, %v698, 0
    %705 = vmatpush.msra.mxu0 0.0
    %706 = vmatpush.msra.mxu0 0.0
    %707 = vmatpush.msra.mxu0 0.0
    %708 = vmatpush.msra.mxu0 0.0
    %709 = vmatpush.msra.mxu0 0.0
    %710 = vmatpush.msra.mxu0 0.0
    %711 = vmatpush.msra.mxu0 0.0
    %712 = vmatpush.msra.mxu0 0.0
    %713 = vmatpush.msra.mxu0 0.0
    %714 = vmatpush.msra.mxu0 0.0
    %715 = vmatpush.msra.mxu0 0.0
    %716 = vmatpush.msra.mxu0 0.0
    %717 = vmatpush.msra.mxu0 %v52
    %718 = vmatpush.msra.mxu0 %v51
    %719 = vmatpush.msra.mxu0 %v50
    %720 = vmatpush.msra.mxu0 %v49
    %721 = vmatmul.f32.gmra.mxu0 %v700
    %v722 = vpop.f32.mrf.mxu0
    %v723 = vadd.f32 %v68, %v722
    %724 = vmatmul.f32.gmra.mxu0 %v703
    %v725 = vpop.f32.mrf.mxu0
    %v726 = vadd.f32 %v68, %v725
    %727 = vdwg.mxu0
    %v728 = vadd.f32 %v43, %v723
    %v729 = vadd.f32 %v44, %v726
    %v730 = vsel %vm142, %v728, 0.0
    %731 = vadd.xlane.f32.xlu0 %v730
    %v732 = vpop.xlane.xlu0 %731
    %v733 = vsel %vm142, %v729, 0.0
    %734 = vadd.xlane.f32.xlu0 %v733
    %v735 = vpop.xlane.xlu0 %734
    %v736 = vrcp.pop 32.0
    %v737 = vmul.f32 32.0, %v736
    %v738 = vsub.f32 1.0, %v737
    %v739 = vmul.f32 %v736, %v738
    %v740 = vadd.f32 %v736, %v739
    %vm741 = vweird.f32 %v736
    %v742 = vsel %vm741, %v736, %v740
    %v743 = vmul.f32 %v732, %v742
    %v744 = vmul.f32 %v735, %v742
    %v745 = vsub.f32 %v728, %v743
    %v746 = vsub.f32 %v729, %v744
    %v747 = vmul.f32 %v745, %v745
    %v748 = vmul.f32 %v746, %v746
    %v749 = vsel %vm142, %v747, 0.0
    %750 = vadd.xlane.f32.xlu0 %v749
    %v751 = vpop.xlane.xlu0 %750
    %v752 = vsel %vm142, %v748, 0.0
    %753 = vadd.xlane.f32.xlu0 %v752
    %v754 = vpop.xlane.xlu0 %753
    %v755 = vmul.f32 %v751, %v742
    %v756 = vmul.f32 %v754, %v742
    %v757 = vadd.f32 %v755, 1e-05
    %v758 = vadd.f32 %v756, 1e-05
    %v759 = vrsqrt.pop %v757
    %v760 = vmul.f32 %v759, %v757
    %v761 = vmul.f32 %v760, %v759
    %v762 = vmul.f32 0.5, %v761
    %v763 = vsub.f32 1.5, %v762
    %v764 = vmul.f32 %v759, %v763
    %vm765 = vweird.f32 %v757
    %vm766 = vweird.f32 %v759
    %vm767 = vmor %vm765, %vm766
    %v768 = vsel %vm767, %v759, %v764
    %v769 = vrsqrt.pop %v758
    %v770 = vmul.f32 %v769, %v758
    %v771 = vmul.f32 %v770, %v769
    %v772 = vmul.f32 0.5, %v771
    %v773 = vsub.f32 1.5, %v772
    %v774 = vmul.f32 %v769, %v773
    %vm775 = vweird.f32 %v758
    %vm776 = vweird.f32 %v769
    %vm777 = vmor %vm775, %vm776
    %v778 = vsel %vm777, %v769, %v774
    %v779 = vmul.f32 %v745, %v768
    %v780 = vmul.f32 %v746, %v778
    %v781 = vmul.f32 %v779, %v74
    %v782 = vmul.f32 %v780, %v74
    %v783 = vadd.f32 %v781, %v76
    %v784 = vadd.f32 %v782, %v76
    %v786 = vsel %vm142, %v783, 0
    %v789 = vsel %vm142, %v784, 0
    %791 = vmatpush.msra.mxu0 0.0
    %792 = vmatpush.msra.mxu0 0.0
    %793 = vmatpush.msra.mxu0 0.0
    %794 = vmatpush.msra.mxu0 0.0
    %795 = vmatpush.msra.mxu0 0.0
    %796 = vmatpush.msra.mxu0 0.0
    %797 = vmatpush.msra.mxu0 0.0
    %798 = vmatpush.msra.mxu0 0.0
    %799 = vmatpush.msra.mxu0 0.0
    %800 = vmatpush.msra.mxu0 0.0
    %801 = vmatpush.msra.mxu0 0.0
    %802 = vmatpush.msra.mxu0 0.0
    %803 = vmatpush.msra.mxu0 %v56
    %804 = vmatpush.msra.mxu0 %v55
    %805 = vmatpush.msra.mxu0 %v54
    %806 = vmatpush.msra.mxu0 %v53
    %807 = vmatmul.f32.gmra.mxu0 %v786
    %v808 = vpop.f32.mrf.mxu0
    %v809 = vadd.f32 %v70, %v808
    %810 = vmatmul.f32.gmra.mxu0 %v789
    %v811 = vpop.f32.mrf.mxu0
    %v812 = vadd.f32 %v70, %v811
    %813 = vdwg.mxu0
    %v814 = vmax.f32 %v809, 0.0
    %v815 = vmax.f32 %v812, 0.0
    %vm816 = vcmask 523264
    %v818 = vsel %vm816, %v814, 0
    %v821 = vsel %vm816, %v815, 0
    %823 = vmatpush.msra.mxu0 0.0
    %824 = vmatpush.msra.mxu0 0.0
    %825 = vmatpush.msra.mxu0 0.0
    %826 = vmatpush.msra.mxu0 0.0
    %827 = vmatpush.msra.mxu0 0.0
    %828 = vmatpush.msra.mxu0 0.0
    %829 = vmatpush.msra.mxu0 0.0
    %830 = vmatpush.msra.mxu0 0.0
    %831 = vmatpush.msra.mxu0 %v64
    %832 = vmatpush.msra.mxu0 %v63
    %833 = vmatpush.msra.mxu0 %v62
    %834 = vmatpush.msra.mxu0 %v61
    %835 = vmatpush.msra.mxu0 %v60
    %836 = vmatpush.msra.mxu0 %v59
    %837 = vmatpush.msra.mxu0 %v58
    %838 = vmatpush.msra.mxu0 %v57
    %839 = vmatmul.f32.gmra.mxu0 %v818
    %v840 = vpop.f32.mrf.mxu0
    %v841 = vadd.f32 %v72, %v840
    %842 = vmatmul.f32.gmra.mxu0 %v821
    %v843 = vpop.f32.mrf.mxu0
    %v844 = vadd.f32 %v72, %v843
    %845 = vdwg.mxu0
    %v846 = vadd.f32 %v783, %v841
    %v847 = vadd.f32 %v784, %v844
    %v848 = vsel %vm142, %v846, 0.0
    %849 = vadd.xlane.f32.xlu0 %v848
    %v850 = vpop.xlane.xlu0 %849
    %v851 = vsel %vm142, %v847, 0.0
    %852 = vadd.xlane.f32.xlu0 %v851
    %v853 = vpop.xlane.xlu0 %852
    %v854 = vmul.f32 %v850, %v742
    %v855 = vmul.f32 %v853, %v742
    %v856 = vsub.f32 %v846, %v854
    %v857 = vsub.f32 %v847, %v855
    %v858 = vmul.f32 %v856, %v856
    %v859 = vmul.f32 %v857, %v857
    %v860 = vsel %vm142, %v858, 0.0
    %861 = vadd.xlane.f32.xlu0 %v860
    %v862 = vpop.xlane.xlu0 %861
    %v863 = vsel %vm142, %v859, 0.0
    %864 = vadd.xlane.f32.xlu0 %v863
    %v865 = vpop.xlane.xlu0 %864
    %v866 = vmul.f32 %v862, %v742
    %v867 = vmul.f32 %v865, %v742
    %v868 = vadd.f32 %v866, 1e-05
    %v869 = vadd.f32 %v867, 1e-05
    %v870 = vrsqrt.pop %v868
    %v871 = vmul.f32 %v870, %v868
    %v872 = vmul.f32 %v871, %v870
    %v873 = vmul.f32 0.5, %v872
    %v874 = vsub.f32 1.5, %v873
    %v875 = vmul.f32 %v870, %v874
    %vm876 = vweird.f32 %v868
    %vm877 = vweird.f32 %v870
    %vm878 = vmor %vm876, %vm877
    %v879 = vsel %vm878, %v870, %v875
    %v880 = vrsqrt.pop %v869
    %v881 = vmul.f32 %v880, %v869
    %v882 = vmul.f32 %v881, %v880
    %v883 = vmul.f32 0.5, %v882
    %v884 = vsub.f32 1.5, %v883
    %v885 = vmul.f32 %v880, %v884
    %vm886 = vweird.f32 %v869
    %vm887 = vweird.f32 %v880
    %vm888 = vmor %vm886, %vm887
    %v889 = vsel %vm888, %v880, %v885
    %v890 = vmul.f32 %v856, %v879
    %v891 = vmul.f32 %v857, %v889
    %v892 = vmul.f32 %v890, %v78
    %v893 = vmul.f32 %v891, %v78
    %v894 = vadd.f32 %v892, %v80
    %v895 = vadd.f32 %v893, %v80
    %896 = vst.msk [vmem:[%s2] sm:$0xff] %vm142, %v894
    %897 = vst.msk [vmem:[%s2 + $0x8] sm:$0xff] %vm142, %v895
    %v899 = vsel %vm142, %v894, 0
    %v902 = vsel %vm142, %v895, 0
    %904 = vmatpush.msra.mxu0 0.0
    %905 = vmatpush.msra.mxu0 0.0
    %906 = vmatpush.msra.mxu0 0.0
    %907 = vmatpush.msra.mxu0 0.0
    %908 = vmatpush.msra.mxu0 0.0
    %909 = vmatpush.msra.mxu0 0.0
    %910 = vmatpush.msra.mxu0 0.0
    %911 = vmatpush.msra.mxu0 0.0
    %912 = vmatpush.msra.mxu0 0.0
    %913 = vmatpush.msra.mxu0 0.0
    %914 = vmatpush.msra.mxu0 0.0
    %915 = vmatpush.msra.mxu0 0.0
    %916 = vmatpush.msra.mxu0 %v48
    %917 = vmatpush.msra.mxu0 %v47
    %918 = vmatpush.msra.mxu0 %v46
    %919 = vmatpush.msra.mxu0 %v45
    %920 = vmatmul.f32.gmra.mxu0 %v899
    %v921 = vpop.f32.mrf.mxu0
    %v922 = vadd.f32 %v66, %v921
    %923 = vmatmul.f32.gmra.mxu0 %v902
    %v924 = vpop.f32.mrf.mxu0
    %v925 = vadd.f32 %v66, %v924
    %926 = vdwg.mxu0
    %v927 = vmul.f32 %v922, %v174
    %v928 = vmul.f32 %v925, %v174
    %931 = vrot.lane.b32.xlu0 %v927, 96
    %v932 = vpop.permute.xlu0 %931
    %933 = vrot.lane.b32.xlu0 %v928, 96
    %v934 = vpop.permute.xlu0 %933
    %v936 = vsel %vm142, %v922, 0
    %v939 = vsel %vm142, %v925, 0
    %v941 = vsel %vm142, %v932, 0
    %v943 = vsel %vm142, %v934, 0
    %945 = vmatpush.xpose.msra.mxu0 0.0
    %946 = vmatpush.xpose.msra.mxu0 0.0
    %947 = vmatpush.xpose.msra.mxu0 0.0
    %948 = vmatpush.xpose.msra.mxu0 0.0
    %949 = vmatpush.xpose.msra.mxu0 0.0
    %950 = vmatpush.xpose.msra.mxu0 0.0
    %951 = vmatpush.xpose.msra.mxu0 0.0
    %952 = vmatpush.xpose.msra.mxu0 0.0
    %953 = vmatpush.xpose.msra.mxu0 0.0
    %954 = vmatpush.xpose.msra.mxu0 0.0
    %955 = vmatpush.xpose.msra.mxu0 0.0
    %956 = vmatpush.xpose.msra.mxu0 0.0
    %957 = vmatpush.xpose.msra.mxu0 0.0
    %958 = vmatpush.xpose.msra.mxu0 0.0
    %959 = vmatpush.xpose.msra.mxu0 %v943
    %960 = vmatpush.xpose.msra.mxu0 %v941
    %961 = vmatmul.f32.gmra.mxu0 %v936
    %v962 = vpop.f32.mrf.mxu0
    %v963 = vadd.f32 %v140, %v962
    %964 = vmatmul.f32.gmra.mxu0 %v939
    %v965 = vpop.f32.mrf.mxu0
    %v966 = vadd.f32 %v141, %v965
    %967 = vdwg.mxu0
    %v968 = vsel %vm217, %v963, -inf
    %969 = vmax.xlane.f32.xlu0 %v968
    %v970 = vpop.xlane.xlu0 %969
    %v971 = vsel %vm217, %v966, -inf
    %972 = vmax.xlane.f32.xlu0 %v971
    %v973 = vpop.xlane.xlu0 %972
    %v974 = vsub.f32 %v963, %v970
    %v975 = vsub.f32 %v966, %v973
    %v976 = vmul.f32 %v974, 1.442695
    %v977 = vpow.pop %v976
    %v978 = vmul.f32 %v975, 1.442695
    %v979 = vpow.pop %v978
    %v980 = vsel %vm217, %v977, 0.0
    %981 = vadd.xlane.f32.xlu0 %v980
    %v982 = vpop.xlane.xlu0 %981
    %v983 = vsel %vm217, %v979, 0.0
    %984 = vadd.xlane.f32.xlu0 %v983
    %v985 = vpop.xlane.xlu0 %984
    %v986 = vrcp.pop %v982
    %v987 = vmul.f32 %v982, %v986
    %v988 = vsub.f32 1.0, %v987
    %v989 = vmul.f32 %v986, %v988
    %v990 = vadd.f32 %v986, %v989
    %vm991 = vweird.f32 %v982
    %vm992 = vweird.f32 %v986
    %vm993 = vmor %vm991, %vm992
    %v994 = vsel %vm993, %v986, %v990
    %v995 = vand.u32 2147483647, %v982
    %vm996 = vcmp.eq.f32.partialorder %v995, 8.507059e+37
    %v997 = vand.u32 %v982, 2147483648
    %v998 = vor.u32 1.1754944e-38, %v997
    %v999 = vsel %vm996, %v998, %v994
    %v1000 = vrcp.pop %v985
    %v1001 = vmul.f32 %v985, %v1000
    %v1002 = vsub.f32 1.0, %v1001
    %v1003 = vmul.f32 %v1000, %v1002
    %v1004 = vadd.f32 %v1000, %v1003
    %vm1005 = vweird.f32 %v985
    %vm1006 = vweird.f32 %v1000
    %vm1007 = vmor %vm1005, %vm1006
    %v1008 = vsel %vm1007, %v1000, %v1004
    %v1009 = vand.u32 2147483647, %v985
    %vm1010 = vcmp.eq.f32.partialorder %v1009, 8.507059e+37
    %v1011 = vand.u32 %v985, 2147483648
    %v1012 = vor.u32 1.1754944e-38, %v1011
    %v1013 = vsel %vm1010, %v1012, %v1008
    %v1014 = vmul.f32 %v977, %v999
    %v1015 = vmul.f32 %v979, %v1013
    %v1016 = vmul.f32 %v922, %v267
    %v1017 = vmul.f32 %v925, %v267
    %v1018 = vmul.f32 %v922, %v273
    %v1019 = vmul.f32 %v925, %v273
    %1022 = vrot.lane.b32.xlu0 %v1018, 96
    %v1023 = vpop.permute.xlu0 %1022
    %1024 = vrot.lane.b32.xlu0 %v1019, 96
    %v1025 = vpop.permute.xlu0 %1024
    %v1026 = vsel %vm142, %v1023, 0
    %v1028 = vsel %vm142, %v1025, 0
    %1030 = vmatpush.xpose.msra.mxu0 0.0
    %1031 = vmatpush.xpose.msra.mxu0 0.0
    %1032 = vmatpush.xpose.msra.mxu0 0.0
    %1033 = vmatpush.xpose.msra.mxu0 0.0
    %1034 = vmatpush.xpose.msra.mxu0 0.0
    %1035 = vmatpush.xpose.msra.mxu0 0.0
    %1036 = vmatpush.xpose.msra.mxu0 0.0
    %1037 = vmatpush.xpose.msra.mxu0 0.0
    %1038 = vmatpush.xpose.msra.mxu0 0.0
    %1039 = vmatpush.xpose.msra.mxu0 0.0
    %1040 = vmatpush.xpose.msra.mxu0 0.0
    %1041 = vmatpush.xpose.msra.mxu0 0.0
    %1042 = vmatpush.xpose.msra.mxu0 0.0
    %1043 = vmatpush.xpose.msra.mxu0 0.0
    %1044 = vmatpush.xpose.msra.mxu0 %v1028
    %1045 = vmatpush.xpose.msra.mxu0 %v1026
    %1046 = vmatmul.f32.gmra.mxu0 %v936
    %v1047 = vpop.f32.mrf.mxu0
    %v1048 = vadd.f32 %v140, %v1047
    %1049 = vmatmul.f32.gmra.mxu0 %v939
    %v1050 = vpop.f32.mrf.mxu0
    %v1051 = vadd.f32 %v141, %v1050
    %1052 = vdwg.mxu0
    %v1053 = vsel %vm217, %v1048, -inf
    %1054 = vmax.xlane.f32.xlu0 %v1053
    %v1055 = vpop.xlane.xlu0 %1054
    %v1056 = vsel %vm217, %v1051, -inf
    %1057 = vmax.xlane.f32.xlu0 %v1056
    %v1058 = vpop.xlane.xlu0 %1057
    %v1059 = vsub.f32 %v1048, %v1055
    %v1060 = vsub.f32 %v1051, %v1058
    %v1061 = vmul.f32 %v1059, 1.442695
    %v1062 = vpow.pop %v1061
    %v1063 = vmul.f32 %v1060, 1.442695
    %v1064 = vpow.pop %v1063
    %v1065 = vsel %vm217, %v1062, 0.0
    %1066 = vadd.xlane.f32.xlu0 %v1065
    %v1067 = vpop.xlane.xlu0 %1066
    %v1068 = vsel %vm217, %v1064, 0.0
    %1069 = vadd.xlane.f32.xlu0 %v1068
    %v1070 = vpop.xlane.xlu0 %1069
    %v1071 = vrcp.pop %v1067
    %v1072 = vmul.f32 %v1067, %v1071
    %v1073 = vsub.f32 1.0, %v1072
    %v1074 = vmul.f32 %v1071, %v1073
    %v1075 = vadd.f32 %v1071, %v1074
    %vm1076 = vweird.f32 %v1067
    %vm1077 = vweird.f32 %v1071
    %vm1078 = vmor %vm1076, %vm1077
    %v1079 = vsel %vm1078, %v1071, %v1075
    %v1080 = vand.u32 2147483647, %v1067
    %vm1081 = vcmp.eq.f32.partialorder %v1080, 8.507059e+37
    %v1082 = vand.u32 %v1067, 2147483648
    %v1083 = vor.u32 1.1754944e-38, %v1082
    %v1084 = vsel %vm1081, %v1083, %v1079
    %v1085 = vrcp.pop %v1070
    %v1086 = vmul.f32 %v1070, %v1085
    %v1087 = vsub.f32 1.0, %v1086
    %v1088 = vmul.f32 %v1085, %v1087
    %v1089 = vadd.f32 %v1085, %v1088
    %vm1090 = vweird.f32 %v1070
    %vm1091 = vweird.f32 %v1085
    %vm1092 = vmor %vm1090, %vm1091
    %v1093 = vsel %vm1092, %v1085, %v1089
    %v1094 = vand.u32 2147483647, %v1070
    %vm1095 = vcmp.eq.f32.partialorder %v1094, 8.507059e+37
    %v1096 = vand.u32 %v1070, 2147483648
    %v1097 = vor.u32 1.1754944e-38, %v1096
    %v1098 = vsel %vm1095, %v1097, %v1093
    %v1099 = vmul.f32 %v1062, %v1084
    %v1100 = vmul.f32 %v1064, %v1098
    %v1101 = vmul.f32 %v922, %v359
    %v1102 = vmul.f32 %v925, %v359
    %1105 = vrot.lane.b32.xlu0 %v1101, 64
    %v1106 = vpop.permute.xlu0 %1105
    %1107 = vrot.lane.b32.xlu0 %v1102, 64
    %v1108 = vpop.permute.xlu0 %1107
    %v1112 = vsel %vm217, %v1099, 0
    %v1115 = vsel %vm217, %v1100, 0
    %1117 = vmatpush.msra.mxu0 0.0
    %1118 = vmatpush.msra.mxu0 0.0
    %1119 = vmatpush.msra.mxu0 0.0
    %1120 = vmatpush.msra.mxu0 0.0
    %1121 = vmatpush.msra.mxu0 0.0
    %1122 = vmatpush.msra.mxu0 0.0
    %1123 = vmatpush.msra.mxu0 0.0
    %1124 = vmatpush.msra.mxu0 0.0
    %1125 = vmatpush.msra.mxu0 0.0
    %1126 = vmatpush.msra.mxu0 0.0
    %1127 = vmatpush.msra.mxu0 0.0
    %1128 = vmatpush.msra.mxu0 0.0
    %1129 = vmatpush.msra.mxu0 0.0
    %1130 = vmatpush.msra.mxu0 0.0
    %1131 = vmatpush.msra.mxu0 %v1108
    %1132 = vmatpush.msra.mxu0 %v1106
    %1133 = vmatmul.f32.gmra.mxu0 %v1112
    %v1134 = vpop.f32.mrf.mxu0
    %v1135 = vadd.f32 0.0, %v1134
    %1136 = vmatmul.f32.gmra.mxu0 %v1115
    %v1137 = vpop.f32.mrf.mxu0
    %v1138 = vadd.f32 0.0, %v1137
    %1139 = vdwg.mxu0
    %1142 = vrot.lane.b32.xlu0 %v1016, 64
    %v1143 = vpop.permute.xlu0 %1142
    %1144 = vrot.lane.b32.xlu0 %v1017, 64
    %v1145 = vpop.permute.xlu0 %1144
    %v1149 = vsel %vm217, %v1014, 0
    %v1152 = vsel %vm217, %v1015, 0
    %1154 = vmatpush.msra.mxu0 0.0
    %1155 = vmatpush.msra.mxu0 0.0
    %1156 = vmatpush.msra.mxu0 0.0
    %1157 = vmatpush.msra.mxu0 0.0
    %1158 = vmatpush.msra.mxu0 0.0
    %1159 = vmatpush.msra.mxu0 0.0
    %1160 = vmatpush.msra.mxu0 0.0
    %1161 = vmatpush.msra.mxu0 0.0
    %1162 = vmatpush.msra.mxu0 0.0
    %1163 = vmatpush.msra.mxu0 0.0
    %1164 = vmatpush.msra.mxu0 0.0
    %1165 = vmatpush.msra.mxu0 0.0
    %1166 = vmatpush.msra.mxu0 0.0
    %1167 = vmatpush.msra.mxu0 0.0
    %1168 = vmatpush.msra.mxu0 %v1145
    %1169 = vmatpush.msra.mxu0 %v1143
    %1170 = vmatmul.f32.gmra.mxu0 %v1149
    %v1171 = vpop.f32.mrf.mxu0
    %v1172 = vadd.f32 %v1135, %v1171
    %1173 = vmatmul.f32.gmra.mxu0 %v1152
    %v1174 = vpop.f32.mrf.mxu0
    %v1175 = vadd.f32 %v1138, %v1174
    %1176 = vdwg.mxu0
    %v1177 = vmul.f32 %v922, %v439
    %v1178 = vmul.f32 %v925, %v439
    %1181 = vrot.lane.b32.xlu0 %v1177, 96
    %v1182 = vpop.permute.xlu0 %1181
    %1183 = vrot.lane.b32.xlu0 %v1178, 96
    %v1184 = vpop.permute.xlu0 %1183
    %v1185 = vsel %vm142, %v1182, 0
    %v1187 = vsel %vm142, %v1184, 0
    %1189 = vmatpush.xpose.msra.mxu0 0.0
    %1190 = vmatpush.xpose.msra.mxu0 0.0
    %1191 = vmatpush.xpose.msra.mxu0 0.0
    %1192 = vmatpush.xpose.msra.mxu0 0.0
    %1193 = vmatpush.xpose.msra.mxu0 0.0
    %1194 = vmatpush.xpose.msra.mxu0 0.0
    %1195 = vmatpush.xpose.msra.mxu0 0.0
    %1196 = vmatpush.xpose.msra.mxu0 0.0
    %1197 = vmatpush.xpose.msra.mxu0 0.0
    %1198 = vmatpush.xpose.msra.mxu0 0.0
    %1199 = vmatpush.xpose.msra.mxu0 0.0
    %1200 = vmatpush.xpose.msra.mxu0 0.0
    %1201 = vmatpush.xpose.msra.mxu0 0.0
    %1202 = vmatpush.xpose.msra.mxu0 0.0
    %1203 = vmatpush.xpose.msra.mxu0 %v1187
    %1204 = vmatpush.xpose.msra.mxu0 %v1185
    %1205 = vmatmul.f32.gmra.mxu0 %v936
    %v1206 = vpop.f32.mrf.mxu0
    %v1207 = vadd.f32 %v140, %v1206
    %1208 = vmatmul.f32.gmra.mxu0 %v939
    %v1209 = vpop.f32.mrf.mxu0
    %v1210 = vadd.f32 %v141, %v1209
    %1211 = vdwg.mxu0
    %v1212 = vsel %vm217, %v1207, -inf
    %1213 = vmax.xlane.f32.xlu0 %v1212
    %v1214 = vpop.xlane.xlu0 %1213
    %v1215 = vsel %vm217, %v1210, -inf
    %1216 = vmax.xlane.f32.xlu0 %v1215
    %v1217 = vpop.xlane.xlu0 %1216
    %v1218 = vsub.f32 %v1207, %v1214
    %v1219 = vsub.f32 %v1210, %v1217
    %v1220 = vmul.f32 %v1218, 1.442695
    %v1221 = vpow.pop %v1220
    %v1222 = vmul.f32 %v1219, 1.442695
    %v1223 = vpow.pop %v1222
    %v1224 = vsel %vm217, %v1221, 0.0
    %1225 = vadd.xlane.f32.xlu0 %v1224
    %v1226 = vpop.xlane.xlu0 %1225
    %v1227 = vsel %vm217, %v1223, 0.0
    %1228 = vadd.xlane.f32.xlu0 %v1227
    %v1229 = vpop.xlane.xlu0 %1228
    %v1230 = vrcp.pop %v1226
    %v1231 = vmul.f32 %v1226, %v1230
    %v1232 = vsub.f32 1.0, %v1231
    %v1233 = vmul.f32 %v1230, %v1232
    %v1234 = vadd.f32 %v1230, %v1233
    %vm1235 = vweird.f32 %v1226
    %vm1236 = vweird.f32 %v1230
    %vm1237 = vmor %vm1235, %vm1236
    %v1238 = vsel %vm1237, %v1230, %v1234
    %v1239 = vand.u32 2147483647, %v1226
    %vm1240 = vcmp.eq.f32.partialorder %v1239, 8.507059e+37
    %v1241 = vand.u32 %v1226, 2147483648
    %v1242 = vor.u32 1.1754944e-38, %v1241
    %v1243 = vsel %vm1240, %v1242, %v1238
    %v1244 = vrcp.pop %v1229
    %v1245 = vmul.f32 %v1229, %v1244
    %v1246 = vsub.f32 1.0, %v1245
    %v1247 = vmul.f32 %v1244, %v1246
    %v1248 = vadd.f32 %v1244, %v1247
    %vm1249 = vweird.f32 %v1229
    %vm1250 = vweird.f32 %v1244
    %vm1251 = vmor %vm1249, %vm1250
    %v1252 = vsel %vm1251, %v1244, %v1248
    %v1253 = vand.u32 2147483647, %v1229
    %vm1254 = vcmp.eq.f32.partialorder %v1253, 8.507059e+37
    %v1255 = vand.u32 %v1229, 2147483648
    %v1256 = vor.u32 1.1754944e-38, %v1255
    %v1257 = vsel %vm1254, %v1256, %v1252
    %v1258 = vmul.f32 %v1221, %v1243
    %v1259 = vmul.f32 %v1223, %v1257
    %v1260 = vmul.f32 %v922, %v525
    %v1261 = vmul.f32 %v925, %v525
    %1264 = vrot.lane.b32.xlu0 %v1260, 64
    %v1265 = vpop.permute.xlu0 %1264
    %1266 = vrot.lane.b32.xlu0 %v1261, 64
    %v1267 = vpop.permute.xlu0 %1266
    %v1271 = vsel %vm217, %v1258, 0
    %v1274 = vsel %vm217, %v1259, 0
    %1276 = vmatpush.msra.mxu0 0.0
    %1277 = vmatpush.msra.mxu0 0.0
    %1278 = vmatpush.msra.mxu0 0.0
    %1279 = vmatpush.msra.mxu0 0.0
    %1280 = vmatpush.msra.mxu0 0.0
    %1281 = vmatpush.msra.mxu0 0.0
    %1282 = vmatpush.msra.mxu0 0.0
    %1283 = vmatpush.msra.mxu0 0.0
    %1284 = vmatpush.msra.mxu0 0.0
    %1285 = vmatpush.msra.mxu0 0.0
    %1286 = vmatpush.msra.mxu0 0.0
    %1287 = vmatpush.msra.mxu0 0.0
    %1288 = vmatpush.msra.mxu0 0.0
    %1289 = vmatpush.msra.mxu0 0.0
    %1290 = vmatpush.msra.mxu0 %v1267
    %1291 = vmatpush.msra.mxu0 %v1265
    %1292 = vmatmul.f32.gmra.mxu0 %v1271
    %v1293 = vpop.f32.mrf.mxu0
    %v1294 = vadd.f32 0.0, %v1293
    %1295 = vmatmul.f32.gmra.mxu0 %v1274
    %v1296 = vpop.f32.mrf.mxu0
    %v1297 = vadd.f32 0.0, %v1296
    %1298 = vdwg.mxu0
    %v1299 = vadd.f32 %v1172, %v1294
    %v1300 = vadd.f32 %v1175, %v1297
    %v1301 = vmul.f32 %v922, %v570
    %v1302 = vmul.f32 %v925, %v570
    %1305 = vrot.lane.b32.xlu0 %v1301, 96
    %v1306 = vpop.permute.xlu0 %1305
    %1307 = vrot.lane.b32.xlu0 %v1302, 96
    %v1308 = vpop.permute.xlu0 %1307
    %v1309 = vsel %vm142, %v1306, 0
    %v1311 = vsel %vm142, %v1308, 0
    %1313 = vmatpush.xpose.msra.mxu0 0.0
    %1314 = vmatpush.xpose.msra.mxu0 0.0
    %1315 = vmatpush.xpose.msra.mxu0 0.0
    %1316 = vmatpush.xpose.msra.mxu0 0.0
    %1317 = vmatpush.xpose.msra.mxu0 0.0
    %1318 = vmatpush.xpose.msra.mxu0 0.0
    %1319 = vmatpush.xpose.msra.mxu0 0.0
    %1320 = vmatpush.xpose.msra.mxu0 0.0
    %1321 = vmatpush.xpose.msra.mxu0 0.0
    %1322 = vmatpush.xpose.msra.mxu0 0.0
    %1323 = vmatpush.xpose.msra.mxu0 0.0
    %1324 = vmatpush.xpose.msra.mxu0 0.0
    %1325 = vmatpush.xpose.msra.mxu0 0.0
    %1326 = vmatpush.xpose.msra.mxu0 0.0
    %1327 = vmatpush.xpose.msra.mxu0 %v1311
    %1328 = vmatpush.xpose.msra.mxu0 %v1309
    %1329 = vmatmul.f32.gmra.mxu0 %v936
    %v1330 = vpop.f32.mrf.mxu0
    %v1331 = vadd.f32 %v140, %v1330
    %1332 = vmatmul.f32.gmra.mxu0 %v939
    %v1333 = vpop.f32.mrf.mxu0
    %v1334 = vadd.f32 %v141, %v1333
    %1335 = vdwg.mxu0
    %v1336 = vsel %vm217, %v1331, -inf
    %1337 = vmax.xlane.f32.xlu0 %v1336
    %v1338 = vpop.xlane.xlu0 %1337
    %v1339 = vsel %vm217, %v1334, -inf
    %1340 = vmax.xlane.f32.xlu0 %v1339
    %v1341 = vpop.xlane.xlu0 %1340
    %v1342 = vsub.f32 %v1331, %v1338
    %v1343 = vsub.f32 %v1334, %v1341
    %v1344 = vmul.f32 %v1342, 1.442695
    %v1345 = vpow.pop %v1344
    %v1346 = vmul.f32 %v1343, 1.442695
    %v1347 = vpow.pop %v1346
    %v1348 = vsel %vm217, %v1345, 0.0
    %1349 = vadd.xlane.f32.xlu0 %v1348
    %v1350 = vpop.xlane.xlu0 %1349
    %v1351 = vsel %vm217, %v1347, 0.0
    %1352 = vadd.xlane.f32.xlu0 %v1351
    %v1353 = vpop.xlane.xlu0 %1352
    %v1354 = vrcp.pop %v1350
    %v1355 = vmul.f32 %v1350, %v1354
    %v1356 = vsub.f32 1.0, %v1355
    %v1357 = vmul.f32 %v1354, %v1356
    %v1358 = vadd.f32 %v1354, %v1357
    %vm1359 = vweird.f32 %v1350
    %vm1360 = vweird.f32 %v1354
    %vm1361 = vmor %vm1359, %vm1360
    %v1362 = vsel %vm1361, %v1354, %v1358
    %v1363 = vand.u32 2147483647, %v1350
    %vm1364 = vcmp.eq.f32.partialorder %v1363, 8.507059e+37
    %v1365 = vand.u32 %v1350, 2147483648
    %v1366 = vor.u32 1.1754944e-38, %v1365
    %v1367 = vsel %vm1364, %v1366, %v1362
    %v1368 = vrcp.pop %v1353
    %v1369 = vmul.f32 %v1353, %v1368
    %v1370 = vsub.f32 1.0, %v1369
    %v1371 = vmul.f32 %v1368, %v1370
    %v1372 = vadd.f32 %v1368, %v1371
    %vm1373 = vweird.f32 %v1353
    %vm1374 = vweird.f32 %v1368
    %vm1375 = vmor %vm1373, %vm1374
    %v1376 = vsel %vm1375, %v1368, %v1372
    %v1377 = vand.u32 2147483647, %v1353
    %vm1378 = vcmp.eq.f32.partialorder %v1377, 8.507059e+37
    %v1379 = vand.u32 %v1353, 2147483648
    %v1380 = vor.u32 1.1754944e-38, %v1379
    %v1381 = vsel %vm1378, %v1380, %v1376
    %v1382 = vmul.f32 %v1345, %v1367
    %v1383 = vmul.f32 %v1347, %v1381
    %v1384 = vmul.f32 %v922, %v656
    %v1385 = vmul.f32 %v925, %v656
    %1388 = vrot.lane.b32.xlu0 %v1384, 64
    %v1389 = vpop.permute.xlu0 %1388
    %1390 = vrot.lane.b32.xlu0 %v1385, 64
    %v1391 = vpop.permute.xlu0 %1390
    %v1395 = vsel %vm217, %v1382, 0
    %v1398 = vsel %vm217, %v1383, 0
    %1400 = vmatpush.msra.mxu0 0.0
    %1401 = vmatpush.msra.mxu0 0.0
    %1402 = vmatpush.msra.mxu0 0.0
    %1403 = vmatpush.msra.mxu0 0.0
    %1404 = vmatpush.msra.mxu0 0.0
    %1405 = vmatpush.msra.mxu0 0.0
    %1406 = vmatpush.msra.mxu0 0.0
    %1407 = vmatpush.msra.mxu0 0.0
    %1408 = vmatpush.msra.mxu0 0.0
    %1409 = vmatpush.msra.mxu0 0.0
    %1410 = vmatpush.msra.mxu0 0.0
    %1411 = vmatpush.msra.mxu0 0.0
    %1412 = vmatpush.msra.mxu0 0.0
    %1413 = vmatpush.msra.mxu0 0.0
    %1414 = vmatpush.msra.mxu0 %v1391
    %1415 = vmatpush.msra.mxu0 %v1389
    %1416 = vmatmul.f32.gmra.mxu0 %v1395
    %v1417 = vpop.f32.mrf.mxu0
    %v1418 = vadd.f32 0.0, %v1417
    %1419 = vmatmul.f32.gmra.mxu0 %v1398
    %v1420 = vpop.f32.mrf.mxu0
    %v1421 = vadd.f32 0.0, %v1420
    %1422 = vdwg.mxu0
    %v1423 = vadd.f32 %v1299, %v1418
    %v1424 = vadd.f32 %v1300, %v1421
    %v1426 = vsel %vm142, %v1423, 0
    %v1429 = vsel %vm142, %v1424, 0
    %1431 = vmatpush.msra.mxu0 0.0
    %1432 = vmatpush.msra.mxu0 0.0
    %1433 = vmatpush.msra.mxu0 0.0
    %1434 = vmatpush.msra.mxu0 0.0
    %1435 = vmatpush.msra.mxu0 0.0
    %1436 = vmatpush.msra.mxu0 0.0
    %1437 = vmatpush.msra.mxu0 0.0
    %1438 = vmatpush.msra.mxu0 0.0
    %1439 = vmatpush.msra.mxu0 0.0
    %1440 = vmatpush.msra.mxu0 0.0
    %1441 = vmatpush.msra.mxu0 0.0
    %1442 = vmatpush.msra.mxu0 0.0
    %1443 = vmatpush.msra.mxu0 %v52
    %1444 = vmatpush.msra.mxu0 %v51
    %1445 = vmatpush.msra.mxu0 %v50
    %1446 = vmatpush.msra.mxu0 %v49
    %1447 = vmatmul.f32.gmra.mxu0 %v1426
    %v1448 = vpop.f32.mrf.mxu0
    %v1449 = vadd.f32 %v68, %v1448
    %1450 = vmatmul.f32.gmra.mxu0 %v1429
    %v1451 = vpop.f32.mrf.mxu0
    %v1452 = vadd.f32 %v68, %v1451
    %1453 = vdwg.mxu0
    %v1454 = vadd.f32 %v894, %v1449
    %v1455 = vadd.f32 %v895, %v1452
    %v1456 = vsel %vm142, %v1454, 0.0
    %1457 = vadd.xlane.f32.xlu0 %v1456
    %v1458 = vpop.xlane.xlu0 %1457
    %v1459 = vsel %vm142, %v1455, 0.0
    %1460 = vadd.xlane.f32.xlu0 %v1459
    %v1461 = vpop.xlane.xlu0 %1460
    %v1462 = vmul.f32 %v1458, %v742
    %v1463 = vmul.f32 %v1461, %v742
    %v1464 = vsub.f32 %v1454, %v1462
    %v1465 = vsub.f32 %v1455, %v1463
    %v1466 = vmul.f32 %v1464, %v1464
    %v1467 = vmul.f32 %v1465, %v1465
    %v1468 = vsel %vm142, %v1466, 0.0
    %1469 = vadd.xlane.f32.xlu0 %v1468
    %v1470 = vpop.xlane.xlu0 %1469
    %v1471 = vsel %vm142, %v1467, 0.0
    %1472 = vadd.xlane.f32.xlu0 %v1471
    %v1473 = vpop.xlane.xlu0 %1472
    %v1474 = vmul.f32 %v1470, %v742
    %v1475 = vmul.f32 %v1473, %v742
    %v1476 = vadd.f32 %v1474, 1e-05
    %v1477 = vadd.f32 %v1475, 1e-05
    %v1478 = vrsqrt.pop %v1476
    %v1479 = vmul.f32 %v1478, %v1476
    %v1480 = vmul.f32 %v1479, %v1478
    %v1481 = vmul.f32 0.5, %v1480
    %v1482 = vsub.f32 1.5, %v1481
    %v1483 = vmul.f32 %v1478, %v1482
    %vm1484 = vweird.f32 %v1476
    %vm1485 = vweird.f32 %v1478
    %vm1486 = vmor %vm1484, %vm1485
    %v1487 = vsel %vm1486, %v1478, %v1483
    %v1488 = vrsqrt.pop %v1477
    %v1489 = vmul.f32 %v1488, %v1477
    %v1490 = vmul.f32 %v1489, %v1488
    %v1491 = vmul.f32 0.5, %v1490
    %v1492 = vsub.f32 1.5, %v1491
    %v1493 = vmul.f32 %v1488, %v1492
    %vm1494 = vweird.f32 %v1477
    %vm1495 = vweird.f32 %v1488
    %vm1496 = vmor %vm1494, %vm1495
    %v1497 = vsel %vm1496, %v1488, %v1493
    %v1498 = vmul.f32 %v1464, %v1487
    %v1499 = vmul.f32 %v1465, %v1497
    %v1500 = vmul.f32 %v1498, %v74
    %v1501 = vmul.f32 %v1499, %v74
    %v1502 = vadd.f32 %v1500, %v76
    %v1503 = vadd.f32 %v1501, %v76
    %v1505 = vsel %vm142, %v1502, 0
    %v1508 = vsel %vm142, %v1503, 0
    %1510 = vmatpush.msra.mxu0 0.0
    %1511 = vmatpush.msra.mxu0 0.0
    %1512 = vmatpush.msra.mxu0 0.0
    %1513 = vmatpush.msra.mxu0 0.0
    %1514 = vmatpush.msra.mxu0 0.0
    %1515 = vmatpush.msra.mxu0 0.0
    %1516 = vmatpush.msra.mxu0 0.0
    %1517 = vmatpush.msra.mxu0 0.0
    %1518 = vmatpush.msra.mxu0 0.0
    %1519 = vmatpush.msra.mxu0 0.0
    %1520 = vmatpush.msra.mxu0 0.0
    %1521 = vmatpush.msra.mxu0 0.0
    %1522 = vmatpush.msra.mxu0 %v56
    %1523 = vmatpush.msra.mxu0 %v55
    %1524 = vmatpush.msra.mxu0 %v54
    %1525 = vmatpush.msra.mxu0 %v53
    %1526 = vmatmul.f32.gmra.mxu0 %v1505
    %v1527 = vpop.f32.mrf.mxu0
    %v1528 = vadd.f32 %v70, %v1527
    %1529 = vmatmul.f32.gmra.mxu0 %v1508
    %v1530 = vpop.f32.mrf.mxu0
    %v1531 = vadd.f32 %v70, %v1530
    %1532 = vdwg.mxu0
    %v1533 = vmax.f32 %v1528, 0.0
    %v1534 = vmax.f32 %v1531, 0.0
    %v1536 = vsel %vm816, %v1533, 0
    %v1539 = vsel %vm816, %v1534, 0
    %1541 = vmatpush.msra.mxu0 0.0
    %1542 = vmatpush.msra.mxu0 0.0
    %1543 = vmatpush.msra.mxu0 0.0
    %1544 = vmatpush.msra.mxu0 0.0
    %1545 = vmatpush.msra.mxu0 0.0
    %1546 = vmatpush.msra.mxu0 0.0
    %1547 = vmatpush.msra.mxu0 0.0
    %1548 = vmatpush.msra.mxu0 0.0
    %1549 = vmatpush.msra.mxu0 %v64
    %1550 = vmatpush.msra.mxu0 %v63
    %1551 = vmatpush.msra.mxu0 %v62
    %1552 = vmatpush.msra.mxu0 %v61
    %1553 = vmatpush.msra.mxu0 %v60
    %1554 = vmatpush.msra.mxu0 %v59
    %1555 = vmatpush.msra.mxu0 %v58
    %1556 = vmatpush.msra.mxu0 %v57
    %1557 = vmatmul.f32.gmra.mxu0 %v1536
    %v1558 = vpop.f32.mrf.mxu0
    %v1559 = vadd.f32 %v72, %v1558
    %1560 = vmatmul.f32.gmra.mxu0 %v1539
    %v1561 = vpop.f32.mrf.mxu0
    %v1562 = vadd.f32 %v72, %v1561
    %1563 = vdwg.mxu0
    %v1564 = vadd.f32 %v1502, %v1559
    %v1565 = vadd.f32 %v1503, %v1562
    %v1566 = vsel %vm142, %v1564, 0.0
    %1567 = vadd.xlane.f32.xlu0 %v1566
    %v1568 = vpop.xlane.xlu0 %1567
    %v1569 = vsel %vm142, %v1565, 0.0
    %1570 = vadd.xlane.f32.xlu0 %v1569
    %v1571 = vpop.xlane.xlu0 %1570
    %v1572 = vmul.f32 %v1568, %v742
    %v1573 = vmul.f32 %v1571, %v742
    %v1574 = vsub.f32 %v1564, %v1572
    %v1575 = vsub.f32 %v1565, %v1573
    %v1576 = vmul.f32 %v1574, %v1574
    %v1577 = vmul.f32 %v1575, %v1575
    %v1578 = vsel %vm142, %v1576, 0.0
    %1579 = vadd.xlane.f32.xlu0 %v1578
    %v1580 = vpop.xlane.xlu0 %1579
    %v1581 = vsel %vm142, %v1577, 0.0
    %1582 = vadd.xlane.f32.xlu0 %v1581
    %v1583 = vpop.xlane.xlu0 %1582
    %v1584 = vmul.f32 %v1580, %v742
    %v1585 = vmul.f32 %v1583, %v742
    %v1586 = vadd.f32 %v1584, 1e-05
    %v1587 = vadd.f32 %v1585, 1e-05
    %v1588 = vrsqrt.pop %v1586
    %v1589 = vmul.f32 %v1588, %v1586
    %v1590 = vmul.f32 %v1589, %v1588
    %v1591 = vmul.f32 0.5, %v1590
    %v1592 = vsub.f32 1.5, %v1591
    %v1593 = vmul.f32 %v1588, %v1592
    %vm1594 = vweird.f32 %v1586
    %vm1595 = vweird.f32 %v1588
    %vm1596 = vmor %vm1594, %vm1595
    %v1597 = vsel %vm1596, %v1588, %v1593
    %v1598 = vrsqrt.pop %v1587
    %v1599 = vmul.f32 %v1598, %v1587
    %v1600 = vmul.f32 %v1599, %v1598
    %v1601 = vmul.f32 0.5, %v1600
    %v1602 = vsub.f32 1.5, %v1601
    %v1603 = vmul.f32 %v1598, %v1602
    %vm1604 = vweird.f32 %v1587
    %vm1605 = vweird.f32 %v1598
    %vm1606 = vmor %vm1604, %vm1605
    %v1607 = vsel %vm1606, %v1598, %v1603
    %v1608 = vmul.f32 %v1574, %v1597
    %v1609 = vmul.f32 %v1575, %v1607
    %v1610 = vmul.f32 %v1608, %v78
    %v1611 = vmul.f32 %v1609, %v78
    %v1612 = vadd.f32 %v1610, %v80
    %v1613 = vadd.f32 %v1611, %v80
    %s1614 = scalar_lea.vmem %s2, 16
    %1615 = vst.msk [vmem:[%s1614] sm:$0xff] %vm142, %v1612
    %1616 = vst.msk [vmem:[%s1614 + $0x8] sm:$0xff] %vm142, %v1613
    // Predicated region
    $region18: #{transformer_encoder_forward.1} parent=1 // pred_check
      _
    $region19: #{transformer_encoder_forward.1} parent=1 // pred_check_branch
      %1618 = sbr.rel (0) target = $region21
    $region20: #{transformer_encoder_forward.1} parent=1 // pred_region
      _
    $region21: #{transformer_encoder_forward.1} parent=1 // pred_fallthru
      _
    // Predicated region
    $region22: #{transformer_encoder_forward.1} parent=1 // pred_check
      _
    $region23: #{transformer_encoder_forward.1} parent=1 // pred_check_branch
      %1620 = sbr.rel (0) target = $region25
    $region24: #{transformer_encoder_forward.1} parent=1 // pred_region
      _
    $region25: #{transformer_encoder_forward.1} parent=1 // pred_fallthru
      _
    %1621 = vsyncpa [#allocation3], 1
    %1622 = vsyncpa [#allocation5], 1

</llo_original>
